<compile_context>
chip_gen: v7x
topology: tpu7x:2x2x1
jax: 0.10.0
libtpu: 0.0.40
codegen_flags: <defaults>
</compile_context>

<pallas_src>
import functools

import jax
import jax.numpy as jnp
import numpy as np
from jax import lax
from jax.experimental import pallas as pl
from jax.experimental.pallas import tpu as pltpu


def _round_up(x: int, m: int) -> int:
    return (x + m - 1) // m * m


def _vmem_budget_bytes() -> int:
    """Usable VMEM budget; falls back to a v7x-safe 64 MiB if the query fails."""
    try:
        cap = int(pltpu.get_tpu_info().vmem_capacity_bytes)
    except Exception:  # pragma: no cover - conservative fallback
        cap = 64 * 1024 * 1024
    return min(int(cap * 0.85), 112 * 1024 * 1024)


def _pick_tm(budget, Lcomp, halo, cin_p, C_out, Kfold, in_bytes, st_bytes):
    """Largest lane tile (multiple of 128) whose pass-1 blocks fit the budget."""
    cop = _round_up(C_out, 8)
    tm = 128
    for cand in (2048, 1024, 512, 256, 128):
        tm = min(cand, _round_up(Lcomp, 128))
        Lflat = _round_up(Lcomp, tm)
        Lp = Lflat + halo
        est = (cin_p * Lp * in_bytes                        # resident image (1 buffer)
               + cop * _round_up(Kfold, 128) * in_bytes     # weight slab (1 buffer)
               + 2 * 8 * tm * 4                             # mask tile (2 buffers)
               + 2 * cop * tm * st_bytes                    # conv_out tile (2 buffers)
               + 4 * 8 * _round_up(C_out, 128) * 4          # partial stats
               + _round_up(Kfold, 8) * tm * in_bytes        # in-kernel slab temp
               + cin_p * (tm + halo) * in_bytes             # in-kernel window temp
               + 3 * cop * tm * 4)                          # acc / acc^2 / slack
        if est <= 0.7 * budget:
            return tm
    return tm


def _pick_tc(budget, C_out, Lflat, Ho, Wo, st_bytes):
    """Channel tile for pass 2 (full channels when they fit)."""
    tc = C_out
    while True:
        tcp = _round_up(tc, 8)
        est = (2 * tcp * Lflat * st_bytes                                  # in tiles
               + 2 * tcp * _round_up(Ho, 8) * _round_up(Wo, 128) * 4       # out tiles
               + tcp * Lflat * 4)                                          # f32 temp
        if est <= 0.7 * budget or tc <= 8:
            return tc
        tc = max(8, (tc // 2) // 8 * 8)


# ---------------------------------------------------------------------------
# Kernel 1: fused conv (taps folded into one K = KH*KW*C_in_p MXU dot)
#           + per-tile BatchNorm partial statistics (also on the MXU).
# ---------------------------------------------------------------------------
def _conv_stats_kernel(x_ref, w_ref, mask_ref, y_ref, sum_ref, sqsum_ref, *,
                       taps, tm, halo):
    """Grid = (batch n, output tile i).

    x_ref    : (1, C_in_p, Lp)      whole zero-padded, flattened image (resident).
    w_ref    : (C_out, KH*KW*C_in_p) folded weight slab.
    mask_ref : (1, tm)              1.0 where the flat position is a real output.
    y_ref    : (1, C_out, tm)       conv tile (channels on sublanes, spatial on lanes).
    sum_ref / sqsum_ref : (1, 1, 1, C_out)  per-tile BN partial stats (lane-dense, f32).
    """
    base = pl.multiple_of(pl.program_id(1) * tm, 128)
    window = x_ref[0, :, pl.ds(base, tm + halo)]          # (C_in_p, tm + halo)

    # Fold the KH*KW taps into the contraction dim: every tap is a static
    # lane-shifted slice of the window; stacking them on sublanes gives one
    # (KH*KW*C_in_p, tm) slab -> a single MXU dot with K = KH*KW*C_in_p.
    slab = jnp.concatenate(
        [lax.slice_in_dim(window, off, off + tm, axis=1) for off in taps], axis=0)

    acc = lax.dot_general(w_ref[...], slab,
                          dimension_numbers=(((1,), (0,)), ((), ())),
                          preferred_element_type=jnp.float32)   # (C_out, tm) f32

    y_ref[0, :, :] = acc.astype(y_ref.dtype)

    # BN partial statistics on the MXU: the validity mask is the dot LHS, so
    # masking is free and there are no cross-lane (XLU) reductions.
    m = mask_ref[...]                                      # (1, tm) f32
    sum_ref[0, 0, :, :] = lax.dot_general(
        m, acc, dimension_numbers=(((1,), (1,)), ((), ())),
        preferred_element_type=jnp.float32)                # (1, C_out)
    sqsum_ref[0, 0, :, :] = lax.dot_general(
        m, acc * acc, dimension_numbers=(((1,), (1,)), ((), ())),
        preferred_element_type=jnp.float32)                # (1, C_out)


# ---------------------------------------------------------------------------
# Kernel 2a: BN + ReLU with the Wp -> Wo crop fused (stride == 1 path).
# ---------------------------------------------------------------------------
def _bn_relu_crop_kernel(y_ref, scale_ref, shift_ref, o_ref, *, Ho, Wp, Wo):
    y = y_ref[0].astype(jnp.float32)                       # (tc, Lflat)
    y = jnp.maximum(y * scale_ref[...] + shift_ref[...], 0.0)
    # Fused crop: copy the Wo valid columns of each output row (static slices).
    for h in range(Ho):
        o_ref[0, :, h, :] = y[:, h * Wp:h * Wp + Wo].astype(o_ref.dtype)


# ---------------------------------------------------------------------------
# Kernel 2b: flat BN + ReLU (stride > 1 fallback; crop done by XLA gather).
# ---------------------------------------------------------------------------
def _bn_relu_flat_kernel(y_ref, scale_ref, shift_ref, o_ref):
    y = y_ref[0].astype(jnp.float32)                       # (C_out, tm)
    o_ref[0, :, :] = jnp.maximum(y * scale_ref[...] + shift_ref[...],
                                 0.0).astype(o_ref.dtype)


# ---------------------------------------------------------------------------
# Wrapper
# ---------------------------------------------------------------------------
@functools.partial(
    jax.jit, static_argnames=("stride", "padding", "eps", "compute_dtype"))
def basic_conv2d(x, weight, bias, gamma, beta, *, stride=1, padding=1, eps=1e-3,
                 compute_dtype=jnp.bfloat16):
    """Conv2d -> BatchNorm2d (training-mode batch stats) -> ReLU, NCHW in/out.

    With train-mode BatchNorm the conv bias is cancelled exactly by the batch
    mean subtraction, so it is folded out (argument kept for API parity).
    compute_dtype controls the MXU operand dtype and the dtype of the stored
    conv intermediate; accumulation and BN statistics stay f32.
    """
    del bias  # exactly cancelled by the batch-mean subtraction (see docstring)

    N, C_in, H, W = x.shape
    C_out, _, KH, KW = weight.shape
    p, s_ = int(padding), int(stride)

    Hp, Wp = H + 2 * p, W + 2 * p
    Ho = (Hp - KH) // s_ + 1
    Wo = (Wp - KW) // s_ + 1

    cin_p = _round_up(C_in, 8)
    Kfold = KH * KW * cin_p
    in_bytes = jnp.dtype(compute_dtype).itemsize
    st_bytes = in_bytes                    # conv intermediate stored in compute_dtype
    out_dtype = x.dtype
    budget = _vmem_budget_bytes()

    # ---- flattened padded-coordinate bookkeeping (all static Python ints) ----
    # The conv value whose receptive-field corner is at flat index b = h*Wp + w
    # only needs input elements b + dy*Wp + dx, i.e. every tap is a lane shift
    # of the flattened padded image.  We compute at all bases b < Lcomp (a small
    # fraction are row-wrap garbage) and mask/crop the invalid ones.
    Lcomp = ((Ho - 1) * s_ + 1) * Wp
    max_off = (KH - 1) * Wp + (KW - 1)
    halo = _round_up(max(max_off, 1), 128)
    tm = _pick_tm(budget, Lcomp, halo, cin_p, C_out, Kfold, in_bytes, st_bytes)
    Lflat = _round_up(Lcomp, tm)
    n_mt = Lflat // tm
    Lp = Lflat + halo

    # ---- input prep: channel-pad, spatial zero-pad, flatten (stays NCHW) ----
    x_p = jnp.pad(x.astype(compute_dtype),
                  ((0, 0), (0, cin_p - C_in), (p, p), (p, p)))
    xf = x_p.reshape(N, cin_p, Hp * Wp)
    if Lp > Hp * Wp:
        xf = jnp.pad(xf, ((0, 0), (0, 0), (0, Lp - Hp * Wp)))
    else:
        xf = xf[:, :, :Lp]

    # weights: (C_out, C_in, KH, KW) -> (C_out, KH*KW*C_in_p), tap-major (dy, dx, c)
    w_p = jnp.pad(weight, ((0, 0), (0, cin_p - C_in), (0, 0), (0, 0)))
    w2 = jnp.transpose(w_p, (0, 2, 3, 1)).reshape(C_out, Kfold).astype(compute_dtype)
    taps = tuple(dy * Wp + dx for dy in range(KH) for dx in range(KW))

    # validity mask over flattened padded bases (static, built with numpy)
    b_idx = np.arange(Lflat)
    hh, ww = b_idx // Wp, b_idx % Wp
    valid = ((hh % s_ == 0) & (ww % s_ == 0)
             & (hh // s_ < Ho) & (ww // s_ < Wo))
    mask = jnp.asarray(valid.astype(np.float32)).reshape(1, Lflat)

    cparams = pltpu.CompilerParams(
        dimension_semantics=("parallel", "parallel"),
        vmem_limit_bytes=int(budget))

    # ---- pass 1: conv (single folded dot) + BN partial statistics ----
    kern1 = functools.partial(_conv_stats_kernel, taps=taps, tm=tm, halo=halo)
    conv_out, psum, psq = pl.pallas_call(
        kern1,
        out_shape=(
            jax.ShapeDtypeStruct((N, C_out, Lflat), compute_dtype),
            jax.ShapeDtypeStruct((N, n_mt, 1, C_out), jnp.float32),
            jax.ShapeDtypeStruct((N, n_mt, 1, C_out), jnp.float32),
        ),
        grid_spec=pltpu.PrefetchScalarGridSpec(
            num_scalar_prefetch=0,
            grid=(N, n_mt),
            in_specs=[
                pl.BlockSpec((1, cin_p, Lp), lambda n, i: (n, 0, 0),
                             pipeline_mode=pl.Buffered(1)),     # resident per image
                pl.BlockSpec((C_out, Kfold), lambda n, i: (0, 0),
                             pipeline_mode=pl.Buffered(1)),     # grid-invariant
                pl.BlockSpec((1, tm), lambda n, i: (0, i)),
            ],
            out_specs=(
                pl.BlockSpec((1, C_out, tm), lambda n, i: (n, 0, i)),
                pl.BlockSpec((1, 1, 1, C_out), lambda n, i: (n, i, 0, 0)),
                pl.BlockSpec((1, 1, 1, C_out), lambda n, i: (n, i, 0, 0)),
            ),
        ),
        compiler_params=cparams,
    )(xf, w2, mask)

    # ---- finalize BN statistics (C_out-length vectors: negligible XLA work) ----
    cnt = float(N * Ho * Wo)
    s = jnp.sum(psum, axis=(0, 1, 2))
    ss = jnp.sum(psq, axis=(0, 1, 2))
    mean = s / cnt
    # TODO(synk): E[x^2] - mean^2 can cancel for large-mean activations; fine for
    # conv->BN stems, consider a shifted variance for extreme activation scales.
    var = jnp.maximum(ss / cnt - mean * mean, 0.0)
    inv = gamma.astype(jnp.float32) * lax.rsqrt(var + eps)
    scale = inv.reshape(C_out, 1)
    shift = (beta.astype(jnp.float32) - mean * inv).reshape(C_out, 1)

    # ---- pass 2: BN + ReLU (+ fused crop for stride == 1) ----
    fuse_crop = (s_ == 1) and (Ho <= 256)
    if fuse_crop:
        tc = _pick_tc(budget, C_out, Lflat, Ho, Wo, st_bytes)
        n_ct = pl.cdiv(C_out, tc)
        kern2 = functools.partial(_bn_relu_crop_kernel, Ho=Ho, Wp=Wp, Wo=Wo)
        out = pl.pallas_call(
            kern2,
            out_shape=jax.ShapeDtypeStruct((N, C_out, Ho, Wo), out_dtype),
            grid_spec=pltpu.PrefetchScalarGridSpec(
                num_scalar_prefetch=0,
                grid=(N, n_ct),
                in_specs=[
                    pl.BlockSpec((1, tc, Lflat), lambda n, c: (n, c, 0)),
                    pl.BlockSpec((tc, 1), lambda n, c: (c, 0)),
                    pl.BlockSpec((tc, 1), lambda n, c: (c, 0)),
                ],
                out_specs=pl.BlockSpec((1, tc, Ho, Wo), lambda n, c: (n, c, 0, 0)),
            ),
            compiler_params=cparams,
        )(conv_out, scale, shift)
        return out

    # TODO(synk): fold the strided crop into the kernel for stride > 1 as well;
    # this fallback normalizes the flat padded layout and gathers valid columns
    # with one extra XLA pass.
    y = pl.pallas_call(
        _bn_relu_flat_kernel,
        out_shape=jax.ShapeDtypeStruct((N, C_out, Lflat), out_dtype),
        grid_spec=pltpu.PrefetchScalarGridSpec(
            num_scalar_prefetch=0,
            grid=(N, n_mt),
            in_specs=[
                pl.BlockSpec((1, C_out, tm), lambda n, i: (n, 0, i)),
                pl.BlockSpec((C_out, 1), lambda n, i: (0, 0)),
                pl.BlockSpec((C_out, 1), lambda n, i: (0, 0)),
            ],
            out_specs=pl.BlockSpec((1, C_out, tm), lambda n, i: (n, 0, i)),
        ),
        compiler_params=cparams,
    )(conv_out, scale, shift)
    idx = (np.arange(Ho)[:, None] * s_ * Wp + np.arange(Wo)[None, :] * s_).reshape(-1)
    return jnp.take(y, jnp.asarray(idx), axis=2).reshape(N, C_out, Ho, Wo)


# ---------------------------------------------------------------------------
# Pure-JAX reference (sanity check only)
# ---------------------------------------------------------------------------
def reference(x_nchw, weight, bias, gamma, beta, *, stride=1, padding=1, eps=1e-3):
    y = lax.conv_general_dilated(
        x_nchw, weight,
        window_strides=(stride, stride),
        padding=[(padding, padding), (padding, padding)],
        dimension_numbers=("NCHW", "OIHW", "NCHW"),
    ) + bias.reshape(1, -1, 1, 1)
    mean = jnp.mean(y, axis=(0, 2, 3), keepdims=True)
    var = jnp.mean((y - mean) ** 2, axis=(0, 2, 3), keepdims=True)
    y_hat = (y - mean) * lax.rsqrt(var + eps)
    y_hat = y_hat * gamma.reshape(1, -1, 1, 1) + beta.reshape(1, -1, 1, 1)
    return jnp.maximum(y_hat, 0.0)


if __name__ == "__main__":
    # BasicConv2d(in_channels=4, out_channels=8, kernel_size=3, padding=1)
    N, C_in, H, W = 2, 4, 16, 16
    C_out, KH, KW = 8, 3, 3
    stride, padding, eps = 1, 1, 1e-3

    key = jax.random.PRNGKey(0)
    kx, kw, kb, kg, kbt = jax.random.split(key, 5)

    x = jax.random.normal(kx, (N, C_in, H, W), dtype=jnp.float32)
    weight = jax.random.normal(kw, (C_out, C_in, KH, KW), dtype=jnp.float32) * 0.1
    bias = jax.random.normal(kb, (C_out,), dtype=jnp.float32) * 0.1
    gamma = 1.0 + 0.1 * jax.random.normal(kg, (C_out,), dtype=jnp.float32)
    beta = 0.1 * jax.random.normal(kbt, (C_out,), dtype=jnp.float32)

    ref = reference(x, weight, bias, gamma, beta, stride=stride, padding=padding, eps=eps)

    # f32 MXU-operand / f32-intermediate path: strict parity with the f32 reference.
    out_f32 = basic_conv2d(x, weight, bias, gamma, beta,
                           stride=stride, padding=padding, eps=eps,
                           compute_dtype=jnp.float32)
    out_f32 = jax.block_until_ready(out_f32)
    np.testing.assert_allclose(np.asarray(out_f32), np.asarray(ref), rtol=1e-4, atol=1e-4)

    # Default path (bf16 MXU operands + bf16 stored intermediate): loose-tolerance
    # smoke test, since bf16 operand rounding changes the numerics.
    out_bf16 = basic_conv2d(x, weight, bias, gamma, beta,
                            stride=stride, padding=padding, eps=eps)
    out_bf16 = jax.block_until_ready(out_bf16)
    np.testing.assert_allclose(np.asarray(out_bf16), np.asarray(ref), rtol=1e-1, atol=1e-1)

    print("KERNEL_OK")
</pallas_src>

<mosaic_0001>
module attributes {stable_mosaic.version = 11 : i64} {
  func.func @_conv_stats_kernel(%arg0: i32, %arg1: i32, %arg2: memref<1x8x512xf32, #tpu.memory_space<vmem>>, %arg3: memref<8x72xf32, #tpu.memory_space<vmem>>, %arg4: memref<1x384xf32, #tpu.memory_space<vmem>>, %arg5: memref<1x8x384xf32, #tpu.memory_space<vmem>>, %arg6: memref<1x1x1x8xf32, #tpu.memory_space<vmem>>, %arg7: memref<1x1x1x8xf32, #tpu.memory_space<vmem>>) attributes {dimension_semantics = [#tpu.dimension_semantics<parallel>, #tpu.dimension_semantics<parallel>], iteration_bounds = array<i64: 2, 1>, scalar_prefetch = 0 : i64, scratch_operands = 0 : i64, tpu.core_type = #tpu.core_type<tc>, window_params = [{pipeline_mode = #tpu.pipeline_mode<synchronous>, transform_indices = @transform_0, window_bounds = array<i64: 1, 8, 512>}, {pipeline_mode = #tpu.pipeline_mode<synchronous>, transform_indices = @transform_1, window_bounds = array<i64: 8, 72>}, {transform_indices = @transform_2, window_bounds = array<i64: 1, 384>}, {transform_indices = @transform_3, window_bounds = array<i64: 1, 8, 384>}, {transform_indices = @transform_4, window_bounds = array<i64: 1, 1, 1, 8>}, {transform_indices = @transform_5, window_bounds = array<i64: 1, 1, 1, 8>}]} {
    %c384_i32 = arith.constant 384 : i32
    %0 = arith.muli %arg1, %c384_i32 : i32
    %1 = tpu.assume_multiple %0, 128 : i32
    %c0 = arith.constant 0 : index
    %c0_0 = arith.constant 0 : index
    %2 = arith.index_cast %1 : i32 to index
    %3 = vector.load %arg2[%c0, %c0_0, %2] : memref<1x8x512xf32, #tpu.memory_space<vmem>>, vector<1x8x512xf32>
    %4 = vector.shape_cast %3 : vector<1x8x512xf32> to vector<8x512xf32>
    %5 = vector.extract_strided_slice %4 {offsets = [0, 0], sizes = [8, 384], strides = [1, 1]} : vector<8x512xf32> to vector<8x384xf32>
    %6 = vector.extract_strided_slice %4 {offsets = [0, 1], sizes = [8, 384], strides = [1, 1]} : vector<8x512xf32> to vector<8x384xf32>
    %7 = vector.extract_strided_slice %4 {offsets = [0, 2], sizes = [8, 384], strides = [1, 1]} : vector<8x512xf32> to vector<8x384xf32>
    %8 = vector.extract_strided_slice %4 {offsets = [0, 18], sizes = [8, 384], strides = [1, 1]} : vector<8x512xf32> to vector<8x384xf32>
    %9 = vector.extract_strided_slice %4 {offsets = [0, 19], sizes = [8, 384], strides = [1, 1]} : vector<8x512xf32> to vector<8x384xf32>
    %10 = vector.extract_strided_slice %4 {offsets = [0, 20], sizes = [8, 384], strides = [1, 1]} : vector<8x512xf32> to vector<8x384xf32>
    %11 = vector.extract_strided_slice %4 {offsets = [0, 36], sizes = [8, 384], strides = [1, 1]} : vector<8x512xf32> to vector<8x384xf32>
    %12 = vector.extract_strided_slice %4 {offsets = [0, 37], sizes = [8, 384], strides = [1, 1]} : vector<8x512xf32> to vector<8x384xf32>
    %13 = vector.extract_strided_slice %4 {offsets = [0, 38], sizes = [8, 384], strides = [1, 1]} : vector<8x512xf32> to vector<8x384xf32>
    %14 = tpu.concatenate %5, %6, %7, %8, %9, %10, %11, %12, %13 in 0 : vector<8x384xf32>, vector<8x384xf32>, vector<8x384xf32>, vector<8x384xf32>, vector<8x384xf32>, vector<8x384xf32>, vector<8x384xf32>, vector<8x384xf32>, vector<8x384xf32> -> vector<72x384xf32>
    %c0_1 = arith.constant 0 : index
    %c0_2 = arith.constant 0 : index
    %15 = vector.load %arg3[%c0_1, %c0_2] : memref<8x72xf32, #tpu.memory_space<vmem>>, vector<8x72xf32>
    %cst = arith.constant dense<0.000000e+00> : vector<8x384xf32>
    %16 = tpu.matmul %15, %14, %cst {dimension_numbers = #tpu.dot_dimension_numbers<[1], [0], [0], [1], [0, 0, 1, 1], [], []>} : vector<8x72xf32>, vector<72x384xf32>, vector<8x384xf32> -> vector<8x384xf32>
    %c0_3 = arith.constant 0 : index
    %c0_4 = arith.constant 0 : index
    %c0_5 = arith.constant 0 : index
    %17 = vector.load %arg5[%c0_3, %c0_4, %c0_5] : memref<1x8x384xf32, #tpu.memory_space<vmem>>, vector<1x8x384xf32>
    %18 = vector.shape_cast %17 : vector<1x8x384xf32> to vector<8x384xf32>
    %19 = vector.shape_cast %16 : vector<8x384xf32> to vector<1x8x384xf32>
    tpu.vector_store %arg5[%c0_3, %c0_4, %c0_5], %19 {strides = array<i32>} : memref<1x8x384xf32, #tpu.memory_space<vmem>>, vector<1x8x384xf32>,
    %c0_6 = arith.constant 0 : index
    %c0_7 = arith.constant 0 : index
    %20 = vector.load %arg4[%c0_6, %c0_7] : memref<1x384xf32, #tpu.memory_space<vmem>>, vector<1x384xf32>
    %cst_8 = arith.constant dense<0.000000e+00> : vector<1x8xf32>
    %21 = tpu.matmul %20, %16, %cst_8 {dimension_numbers = #tpu.dot_dimension_numbers<[1], [1], [0], [0], [0, 0, 1, 0], [], []>} : vector<1x384xf32>, vector<8x384xf32>, vector<1x8xf32> -> vector<1x8xf32>
    %c0_9 = arith.constant 0 : index
    %c0_10 = arith.constant 0 : index
    %c0_11 = arith.constant 0 : index
    %c0_12 = arith.constant 0 : index
    %22 = vector.load %arg6[%c0_9, %c0_10, %c0_11, %c0_12] : memref<1x1x1x8xf32, #tpu.memory_space<vmem>>, vector<1x1x1x8xf32>
    %23 = vector.shape_cast %22 : vector<1x1x1x8xf32> to vector<1x8xf32>
    %24 = vector.shape_cast %21 : vector<1x8xf32> to vector<1x1x1x8xf32>
    tpu.vector_store %arg6[%c0_9, %c0_10, %c0_11, %c0_12], %24 {strides = array<i32>} : memref<1x1x1x8xf32, #tpu.memory_space<vmem>>, vector<1x1x1x8xf32>,
    %25 = arith.mulf %16, %16 : vector<8x384xf32>
    %cst_13 = arith.constant dense<0.000000e+00> : vector<1x8xf32>
    %26 = tpu.matmul %20, %25, %cst_13 {dimension_numbers = #tpu.dot_dimension_numbers<[1], [1], [0], [0], [0, 0, 1, 0], [], []>} : vector<1x384xf32>, vector<8x384xf32>, vector<1x8xf32> -> vector<1x8xf32>
    %c0_14 = arith.constant 0 : index
    %c0_15 = arith.constant 0 : index
    %c0_16 = arith.constant 0 : index
    %c0_17 = arith.constant 0 : index
    %27 = vector.load %arg7[%c0_14, %c0_15, %c0_16, %c0_17] : memref<1x1x1x8xf32, #tpu.memory_space<vmem>>, vector<1x1x1x8xf32>
    %28 = vector.shape_cast %27 : vector<1x1x1x8xf32> to vector<1x8xf32>
    %29 = vector.shape_cast %26 : vector<1x8xf32> to vector<1x1x1x8xf32>
    tpu.vector_store %arg7[%c0_14, %c0_15, %c0_16, %c0_17], %29 {strides = array<i32>} : memref<1x1x1x8xf32, #tpu.memory_space<vmem>>, vector<1x1x1x8xf32>,
    return
  }
  func.func @transform_0(%arg0: i32, %arg1: i32) -> (i32, i32, i32) {
    %c0_i32 = arith.constant 0 : i32
    %c0_i32_0 = arith.constant 0 : i32
    %c0_i32_1 = arith.constant 0 : i32
    return %arg0, %c0_i32, %c0_i32_0 : i32, i32, i32
  }
  func.func @transform_1(%arg0: i32, %arg1: i32) -> (i32, i32) {
    %c0_i32 = arith.constant 0 : i32
    %c0_i32_0 = arith.constant 0 : i32
    %c0_i32_1 = arith.constant 0 : i32
    return %c0_i32, %c0_i32_0 : i32, i32
  }
  func.func @transform_2(%arg0: i32, %arg1: i32) -> (i32, i32) {
    %c0_i32 = arith.constant 0 : i32
    %c0_i32_0 = arith.constant 0 : i32
    return %c0_i32, %arg1 : i32, i32
  }
  func.func @transform_3(%arg0: i32, %arg1: i32) -> (i32, i32, i32) {
    %c0_i32 = arith.constant 0 : i32
    %c0_i32_0 = arith.constant 0 : i32
    return %arg0, %c0_i32, %arg1 : i32, i32, i32
  }
  func.func @transform_4(%arg0: i32, %arg1: i32) -> (i32, i32, i32, i32) {
    %c0_i32 = arith.constant 0 : i32
    %c0_i32_0 = arith.constant 0 : i32
    %c0_i32_1 = arith.constant 0 : i32
    return %arg0, %arg1, %c0_i32, %c0_i32_0 : i32, i32, i32, i32
  }
  func.func @transform_5(%arg0: i32, %arg1: i32) -> (i32, i32, i32, i32) {
    %c0_i32 = arith.constant 0 : i32
    %c0_i32_0 = arith.constant 0 : i32
    %c0_i32_1 = arith.constant 0 : i32
    return %arg0, %arg1, %c0_i32, %c0_i32_0 : i32, i32, i32, i32
  }
}

module attributes {stable_mosaic.version = 11 : i64} {
  func.func @_bn_relu_crop_kernel(%arg0: i32, %arg1: i32, %arg2: memref<1x8x384xf32, #tpu.memory_space<vmem>>, %arg3: memref<8x1xf32, #tpu.memory_space<vmem>>, %arg4: memref<8x1xf32, #tpu.memory_space<vmem>>, %arg5: memref<1x8x16x16xf32, #tpu.memory_space<vmem>>) attributes {dimension_semantics = [#tpu.dimension_semantics<parallel>, #tpu.dimension_semantics<parallel>], iteration_bounds = array<i64: 2, 1>, scalar_prefetch = 0 : i64, scratch_operands = 0 : i64, tpu.core_type = #tpu.core_type<tc>, window_params = [{transform_indices = @transform_0, window_bounds = array<i64: 1, 8, 384>}, {transform_indices = @transform_1, window_bounds = array<i64: 8, 1>}, {transform_indices = @transform_2, window_bounds = array<i64: 8, 1>}, {transform_indices = @transform_3, window_bounds = array<i64: 1, 8, 16, 16>}]} {
    %c0 = arith.constant 0 : index
    %c0_0 = arith.constant 0 : index
    %c0_1 = arith.constant 0 : index
    %0 = vector.load %arg2[%c0, %c0_0, %c0_1] : memref<1x8x384xf32, #tpu.memory_space<vmem>>, vector<1x8x384xf32>
    %1 = vector.shape_cast %0 : vector<1x8x384xf32> to vector<8x384xf32>
    %c0_2 = arith.constant 0 : index
    %c0_3 = arith.constant 0 : index
    %2 = vector.load %arg3[%c0_2, %c0_3] : memref<8x1xf32, #tpu.memory_space<vmem>>, vector<8x1xf32>
    %3 = vector.broadcast %2 : vector<8x1xf32> to vector<8x384xf32>
    %4 = arith.mulf %1, %3 : vector<8x384xf32>
    %c0_4 = arith.constant 0 : index
    %c0_5 = arith.constant 0 : index
    %5 = vector.load %arg4[%c0_4, %c0_5] : memref<8x1xf32, #tpu.memory_space<vmem>>, vector<8x1xf32>
    %6 = vector.broadcast %5 : vector<8x1xf32> to vector<8x384xf32>
    %7 = arith.addf %4, %6 : vector<8x384xf32>
    %cst = arith.constant 0.000000e+00 : f32
    %8 = vector.broadcast %cst : f32 to vector<8x384xf32>
    %9 = arith.maximumf %7, %8 : vector<8x384xf32>
    %10 = vector.extract_strided_slice %9 {offsets = [0, 0], sizes = [8, 16], strides = [1, 1]} : vector<8x384xf32> to vector<8x16xf32>
    %c0_6 = arith.constant 0 : index
    %c0_7 = arith.constant 0 : index
    %c0_8 = arith.constant 0 : index
    %c0_9 = arith.constant 0 : index
    %11 = vector.load %arg5[%c0_6, %c0_7, %c0_8, %c0_9] : memref<1x8x16x16xf32, #tpu.memory_space<vmem>>, vector<1x8x1x16xf32>
    %12 = vector.shape_cast %11 : vector<1x8x1x16xf32> to vector<8x16xf32>
    %13 = vector.shape_cast %10 : vector<8x16xf32> to vector<1x8x1x16xf32>
    tpu.vector_store %arg5[%c0_6, %c0_7, %c0_8, %c0_9], %13 {strides = array<i32>} : memref<1x8x16x16xf32, #tpu.memory_space<vmem>>, vector<1x8x1x16xf32>,
    %14 = vector.extract_strided_slice %9 {offsets = [0, 18], sizes = [8, 16], strides = [1, 1]} : vector<8x384xf32> to vector<8x16xf32>
    %c0_10 = arith.constant 0 : index
    %c0_11 = arith.constant 0 : index
    %c1 = arith.constant 1 : index
    %c0_12 = arith.constant 0 : index
    %15 = vector.load %arg5[%c0_10, %c0_11, %c1, %c0_12] : memref<1x8x16x16xf32, #tpu.memory_space<vmem>>, vector<1x8x1x16xf32>
    %16 = vector.shape_cast %15 : vector<1x8x1x16xf32> to vector<8x16xf32>
    %17 = vector.shape_cast %14 : vector<8x16xf32> to vector<1x8x1x16xf32>
    tpu.vector_store %arg5[%c0_10, %c0_11, %c1, %c0_12], %17 {strides = array<i32>} : memref<1x8x16x16xf32, #tpu.memory_space<vmem>>, vector<1x8x1x16xf32>,
    %18 = vector.extract_strided_slice %9 {offsets = [0, 36], sizes = [8, 16], strides = [1, 1]} : vector<8x384xf32> to vector<8x16xf32>
    %c0_13 = arith.constant 0 : index
    %c0_14 = arith.constant 0 : index
    %c2 = arith.constant 2 : index
    %c0_15 = arith.constant 0 : index
    %19 = vector.load %arg5[%c0_13, %c0_14, %c2, %c0_15] : memref<1x8x16x16xf32, #tpu.memory_space<vmem>>, vector<1x8x1x16xf32>
    %20 = vector.shape_cast %19 : vector<1x8x1x16xf32> to vector<8x16xf32>
    %21 = vector.shape_cast %18 : vector<8x16xf32> to vector<1x8x1x16xf32>
    tpu.vector_store %arg5[%c0_13, %c0_14, %c2, %c0_15], %21 {strides = array<i32>} : memref<1x8x16x16xf32, #tpu.memory_space<vmem>>, vector<1x8x1x16xf32>,
    %22 = vector.extract_strided_slice %9 {offsets = [0, 54], sizes = [8, 16], strides = [1, 1]} : vector<8x384xf32> to vector<8x16xf32>
    %c0_16 = arith.constant 0 : index
    %c0_17 = arith.constant 0 : index
    %c3 = arith.constant 3 : index
    %c0_18 = arith.constant 0 : index
    %23 = vector.load %arg5[%c0_16, %c0_17, %c3, %c0_18] : memref<1x8x16x16xf32, #tpu.memory_space<vmem>>, vector<1x8x1x16xf32>
    %24 = vector.shape_cast %23 : vector<1x8x1x16xf32> to vector<8x16xf32>
    %25 = vector.shape_cast %22 : vector<8x16xf32> to vector<1x8x1x16xf32>
    tpu.vector_store %arg5[%c0_16, %c0_17, %c3, %c0_18], %25 {strides = array<i32>} : memref<1x8x16x16xf32, #tpu.memory_space<vmem>>, vector<1x8x1x16xf32>,
    %26 = vector.extract_strided_slice %9 {offsets = [0, 72], sizes = [8, 16], strides = [1, 1]} : vector<8x384xf32> to vector<8x16xf32>
    %c0_19 = arith.constant 0 : index
    %c0_20 = arith.constant 0 : index
    %c4 = arith.constant 4 : index
    %c0_21 = arith.constant 0 : index
    %27 = vector.load %arg5[%c0_19, %c0_20, %c4, %c0_21] : memref<1x8x16x16xf32, #tpu.memory_space<vmem>>, vector<1x8x1x16xf32>
    %28 = vector.shape_cast %27 : vector<1x8x1x16xf32> to vector<8x16xf32>
    %29 = vector.shape_cast %26 : vector<8x16xf32> to vector<1x8x1x16xf32>
    tpu.vector_store %arg5[%c0_19, %c0_20, %c4, %c0_21], %29 {strides = array<i32>} : memref<1x8x16x16xf32, #tpu.memory_space<vmem>>, vector<1x8x1x16xf32>,
    %30 = vector.extract_strided_slice %9 {offsets = [0, 90], sizes = [8, 16], strides = [1, 1]} : vector<8x384xf32> to vector<8x16xf32>
    %c0_22 = arith.constant 0 : index
    %c0_23 = arith.constant 0 : index
    %c5 = arith.constant 5 : index
    %c0_24 = arith.constant 0 : index
    %31 = vector.load %arg5[%c0_22, %c0_23, %c5, %c0_24] : memref<1x8x16x16xf32, #tpu.memory_space<vmem>>, vector<1x8x1x16xf32>
    %32 = vector.shape_cast %31 : vector<1x8x1x16xf32> to vector<8x16xf32>
    %33 = vector.shape_cast %30 : vector<8x16xf32> to vector<1x8x1x16xf32>
    tpu.vector_store %arg5[%c0_22, %c0_23, %c5, %c0_24], %33 {strides = array<i32>} : memref<1x8x16x16xf32, #tpu.memory_space<vmem>>, vector<1x8x1x16xf32>,
    %34 = vector.extract_strided_slice %9 {offsets = [0, 108], sizes = [8, 16], strides = [1, 1]} : vector<8x384xf32> to vector<8x16xf32>
    %c0_25 = arith.constant 0 : index
    %c0_26 = arith.constant 0 : index
    %c6 = arith.constant 6 : index
    %c0_27 = arith.constant 0 : index
    %35 = vector.load %arg5[%c0_25, %c0_26, %c6, %c0_27] : memref<1x8x16x16xf32, #tpu.memory_space<vmem>>, vector<1x8x1x16xf32>
    %36 = vector.shape_cast %35 : vector<1x8x1x16xf32> to vector<8x16xf32>
    %37 = vector.shape_cast %34 : vector<8x16xf32> to vector<1x8x1x16xf32>
    tpu.vector_store %arg5[%c0_25, %c0_26, %c6, %c0_27], %37 {strides = array<i32>} : memref<1x8x16x16xf32, #tpu.memory_space<vmem>>, vector<1x8x1x16xf32>,
    %38 = vector.extract_strided_slice %9 {offsets = [0, 126], sizes = [8, 16], strides = [1, 1]} : vector<8x384xf32> to vector<8x16xf32>
    %c0_28 = arith.constant 0 : index
    %c0_29 = arith.constant 0 : index
    %c7 = arith.constant 7 : index
    %c0_30 = arith.constant 0 : index
    %39 = vector.load %arg5[%c0_28, %c0_29, %c7, %c0_30] : memref<1x8x16x16xf32, #tpu.memory_space<vmem>>, vector<1x8x1x16xf32>
    %40 = vector.shape_cast %39 : vector<1x8x1x16xf32> to vector<8x16xf32>
    %41 = vector.shape_cast %38 : vector<8x16xf32> to vector<1x8x1x16xf32>
    tpu.vector_store %arg5[%c0_28, %c0_29, %c7, %c0_30], %41 {strides = array<i32>} : memref<1x8x16x16xf32, #tpu.memory_space<vmem>>, vector<1x8x1x16xf32>,
    %42 = vector.extract_strided_slice %9 {offsets = [0, 144], sizes = [8, 16], strides = [1, 1]} : vector<8x384xf32> to vector<8x16xf32>
    %c0_31 = arith.constant 0 : index
    %c0_32 = arith.constant 0 : index
    %c8 = arith.constant 8 : index
    %c0_33 = arith.constant 0 : index
    %43 = vector.load %arg5[%c0_31, %c0_32, %c8, %c0_33] : memref<1x8x16x16xf32, #tpu.memory_space<vmem>>, vector<1x8x1x16xf32>
    %44 = vector.shape_cast %43 : vector<1x8x1x16xf32> to vector<8x16xf32>
    %45 = vector.shape_cast %42 : vector<8x16xf32> to vector<1x8x1x16xf32>
    tpu.vector_store %arg5[%c0_31, %c0_32, %c8, %c0_33], %45 {strides = array<i32>} : memref<1x8x16x16xf32, #tpu.memory_space<vmem>>, vector<1x8x1x16xf32>,
    %46 = vector.extract_strided_slice %9 {offsets = [0, 162], sizes = [8, 16], strides = [1, 1]} : vector<8x384xf32> to vector<8x16xf32>
    %c0_34 = arith.constant 0 : index
    %c0_35 = arith.constant 0 : index
    %c9 = arith.constant 9 : index
    %c0_36 = arith.constant 0 : index
    %47 = vector.load %arg5[%c0_34, %c0_35, %c9, %c0_36] : memref<1x8x16x16xf32, #tpu.memory_space<vmem>>, vector<1x8x1x16xf32>
    %48 = vector.shape_cast %47 : vector<1x8x1x16xf32> to vector<8x16xf32>
    %49 = vector.shape_cast %46 : vector<8x16xf32> to vector<1x8x1x16xf32>
    tpu.vector_store %arg5[%c0_34, %c0_35, %c9, %c0_36], %49 {strides = array<i32>} : memref<1x8x16x16xf32, #tpu.memory_space<vmem>>, vector<1x8x1x16xf32>,
    %50 = vector.extract_strided_slice %9 {offsets = [0, 180], sizes = [8, 16], strides = [1, 1]} : vector<8x384xf32> to vector<8x16xf32>
    %c0_37 = arith.constant 0 : index
    %c0_38 = arith.constant 0 : index
    %c10 = arith.constant 10 : index
    %c0_39 = arith.constant 0 : index
    %51 = vector.load %arg5[%c0_37, %c0_38, %c10, %c0_39] : memref<1x8x16x16xf32, #tpu.memory_space<vmem>>, vector<1x8x1x16xf32>
    %52 = vector.shape_cast %51 : vector<1x8x1x16xf32> to vector<8x16xf32>
    %53 = vector.shape_cast %50 : vector<8x16xf32> to vector<1x8x1x16xf32>
    tpu.vector_store %arg5[%c0_37, %c0_38, %c10, %c0_39], %53 {strides = array<i32>} : memref<1x8x16x16xf32, #tpu.memory_space<vmem>>, vector<1x8x1x16xf32>,
    %54 = vector.extract_strided_slice %9 {offsets = [0, 198], sizes = [8, 16], strides = [1, 1]} : vector<8x384xf32> to vector<8x16xf32>
    %c0_40 = arith.constant 0 : index
    %c0_41 = arith.constant 0 : index
    %c11 = arith.constant 11 : index
    %c0_42 = arith.constant 0 : index
    %55 = vector.load %arg5[%c0_40, %c0_41, %c11, %c0_42] : memref<1x8x16x16xf32, #tpu.memory_space<vmem>>, vector<1x8x1x16xf32>
    %56 = vector.shape_cast %55 : vector<1x8x1x16xf32> to vector<8x16xf32>
    %57 = vector.shape_cast %54 : vector<8x16xf32> to vector<1x8x1x16xf32>
    tpu.vector_store %arg5[%c0_40, %c0_41, %c11, %c0_42], %57 {strides = array<i32>} : memref<1x8x16x16xf32, #tpu.memory_space<vmem>>, vector<1x8x1x16xf32>,
    %58 = vector.extract_strided_slice %9 {offsets = [0, 216], sizes = [8, 16], strides = [1, 1]} : vector<8x384xf32> to vector<8x16xf32>
    %c0_43 = arith.constant 0 : index
    %c0_44 = arith.constant 0 : index
    %c12 = arith.constant 12 : index
    %c0_45 = arith.constant 0 : index
    %59 = vector.load %arg5[%c0_43, %c0_44, %c12, %c0_45] : memref<1x8x16x16xf32, #tpu.memory_space<vmem>>, vector<1x8x1x16xf32>
    %60 = vector.shape_cast %59 : vector<1x8x1x16xf32> to vector<8x16xf32>
    %61 = vector.shape_cast %58 : vector<8x16xf32> to vector<1x8x1x16xf32>
    tpu.vector_store %arg5[%c0_43, %c0_44, %c12, %c0_45], %61 {strides = array<i32>} : memref<1x8x16x16xf32, #tpu.memory_space<vmem>>, vector<1x8x1x16xf32>,
    %62 = vector.extract_strided_slice %9 {offsets = [0, 234], sizes = [8, 16], strides = [1, 1]} : vector<8x384xf32> to vector<8x16xf32>
    %c0_46 = arith.constant 0 : index
    %c0_47 = arith.constant 0 : index
    %c13 = arith.constant 13 : index
    %c0_48 = arith.constant 0 : index
    %63 = vector.load %arg5[%c0_46, %c0_47, %c13, %c0_48] : memref<1x8x16x16xf32, #tpu.memory_space<vmem>>, vector<1x8x1x16xf32>
    %64 = vector.shape_cast %63 : vector<1x8x1x16xf32> to vector<8x16xf32>
    %65 = vector.shape_cast %62 : vector<8x16xf32> to vector<1x8x1x16xf32>
    tpu.vector_store %arg5[%c0_46, %c0_47, %c13, %c0_48], %65 {strides = array<i32>} : memref<1x8x16x16xf32, #tpu.memory_space<vmem>>, vector<1x8x1x16xf32>,
    %66 = vector.extract_strided_slice %9 {offsets = [0, 252], sizes = [8, 16], strides = [1, 1]} : vector<8x384xf32> to vector<8x16xf32>
    %c0_49 = arith.constant 0 : index
    %c0_50 = arith.constant 0 : index
    %c14 = arith.constant 14 : index
    %c0_51 = arith.constant 0 : index
    %67 = vector.load %arg5[%c0_49, %c0_50, %c14, %c0_51] : memref<1x8x16x16xf32, #tpu.memory_space<vmem>>, vector<1x8x1x16xf32>
    %68 = vector.shape_cast %67 : vector<1x8x1x16xf32> to vector<8x16xf32>
    %69 = vector.shape_cast %66 : vector<8x16xf32> to vector<1x8x1x16xf32>
    tpu.vector_store %arg5[%c0_49, %c0_50, %c14, %c0_51], %69 {strides = array<i32>} : memref<1x8x16x16xf32, #tpu.memory_space<vmem>>, vector<1x8x1x16xf32>,
    %70 = vector.extract_strided_slice %9 {offsets = [0, 270], sizes = [8, 16], strides = [1, 1]} : vector<8x384xf32> to vector<8x16xf32>
    %c0_52 = arith.constant 0 : index
    %c0_53 = arith.constant 0 : index
    %c15 = arith.constant 15 : index
    %c0_54 = arith.constant 0 : index
    %71 = vector.load %arg5[%c0_52, %c0_53, %c15, %c0_54] : memref<1x8x16x16xf32, #tpu.memory_space<vmem>>, vector<1x8x1x16xf32>
    %72 = vector.shape_cast %71 : vector<1x8x1x16xf32> to vector<8x16xf32>
    %73 = vector.shape_cast %70 : vector<8x16xf32> to vector<1x8x1x16xf32>
    tpu.vector_store %arg5[%c0_52, %c0_53, %c15, %c0_54], %73 {strides = array<i32>} : memref<1x8x16x16xf32, #tpu.memory_space<vmem>>, vector<1x8x1x16xf32>,
    return
  }
  func.func @transform_0(%arg0: i32, %arg1: i32) -> (i32, i32, i32) {
    %c0_i32 = arith.constant 0 : i32
    %c0_i32_0 = arith.constant 0 : i32
    return %arg0, %arg1, %c0_i32 : i32, i32, i32
  }
  func.func @transform_1(%arg0: i32, %arg1: i32) -> (i32, i32) {
    %c0_i32 = arith.constant 0 : i32
    %c0_i32_0 = arith.constant 0 : i32
    return %arg1, %c0_i32 : i32, i32
  }
  func.func @transform_2(%arg0: i32, %arg1: i32) -> (i32, i32) {
    %c0_i32 = arith.constant 0 : i32
    %c0_i32_0 = arith.constant 0 : i32
    return %arg1, %c0_i32 : i32, i32
  }
  func.func @transform_3(%arg0: i32, %arg1: i32) -> (i32, i32, i32, i32) {
    %c0_i32 = arith.constant 0 : i32
    %c0_i32_0 = arith.constant 0 : i32
    %c0_i32_1 = arith.constant 0 : i32
    return %arg0, %arg1, %c0_i32, %c0_i32_0 : i32, i32, i32, i32
  }
}

</mosaic_0001>

<llo_original>
// kernel: basic_conv2d.2
$region0: #{basic_conv2d.2}
  #allocation0 [shape = 'u32[]', space=smem, size = 0x4, offset = 0x4, fixed_abs, tag = 'smem constant byte address 0x4 - core index']
  #allocation1 [shape = 'u32[144,128]{1,0:T(1,128)}', space=vmem, size = 0x12000, scoped, tag = 'internal scratch']
  %s0 = inlined_call_operand.vmem [shape: f32[2,8,512], index: 0, kind: input, shape index: {}]
  %s1 = inlined_call_operand.vmem [shape: f32[8,72], index: 1, kind: input, shape index: {}]
  %s2 = inlined_call_operand.vmem [shape: f32[1,384], index: 2, kind: input, shape index: {}]
  %s3 = inlined_call_operand.vmem [shape: f32[2,8,384], index: 3, kind: output, shape index: {0}]
  %s4 = inlined_call_operand.vmem [shape: f32[2,1,1,8], index: 4, kind: output, shape index: {1}]
  %s5 = inlined_call_operand.vmem [shape: f32[2,1,1,8], index: 5, kind: output, shape index: {2}]
  %6 = xla_tuple %s3, %s4, %s5
  %s7 = sld [smem:[#allocation0]]
  $region61: #{basic_conv2d.2} parent=0
    _
  %s9 = ssub.s32 1, %s7
  %s10 = scalar_select 0, %s9, %s7
  loop: start=0, step=1, limit=4
  $region2: #{basic_conv2d.2} parent=0 // loop_pre_header
    _
  $region3: #{basic_conv2d.2} parent=0 // loop_header
    %s12 = sphi 0, %s16
    %p13 = scmp.ge.s32.totalorder %s12, 4
    %s19 = sphi 0, %s31
    %s20 = sphi 0, %s27
    %s21 = sphi 0, %s19
    %s22 = sphi 0, %s20
    %s23 = sphi 0, %s21
    %s24 = sphi 0, %s22
    %s34 = sphi 0, %s36
    %s37 = sphi 0, %s34
    %s38 = sphi 0, %s37
    %s54 = sphi 0, %s38
    %s58 = sphi 0, %s58
    %s60 = sphi 0, %s58
    %s61 = sphi 0, %s60
    %s75 = sphi 0, %s61
    %s81 = sphi 0, %s83
    %s84 = sphi 0, %s81
    %s85 = sphi 0, %s84
    %s101 = sphi 0, %s85
    %s109 = sphi 0, %s111
    %s112 = sphi 0, %s109
    %s113 = sphi 0, %s112
    %s129 = sphi 0, %s113
    %s137 = sphi 0, %s139
    %s140 = sphi 0, %s137
    %s141 = sphi 0, %s140
    %s157 = sphi 0, %s141
    %s165 = sphi 0, %s167
    %s168 = sphi 0, %s165
    %s169 = sphi 0, %s168
    %s185 = sphi 0, %s169
  $region4: #{basic_conv2d.2} parent=0 // loop_header_branch
    %15 = sbr.rel (%p13) target = $region8
  $region5: #{basic_conv2d.2} parent=0 // loop_body
    %s17 = ssub.s32 %s12, 1
    %s18 = ssub.s32 %s12, 2
    %s25 = sadd.s32 1, %s20
    %p26 = scmp.ge.s32.totalorder %s25, 1
    %s27 = scalar_select %p26, 0, %s25
    %s28 = sadd.s32 1, %s19
    %s29 = scalar_select %p26, %s28, %s19
    %p30 = scmp.ge.s32.totalorder %s29, 2
    %s31 = scalar_select %p30, 0, %s29
    %s32 = ssub.s32 %s19, %s31
    %p33 = scmp.eq.s32.totalorder %s32, 0
    %s35 = sadd.s32 %s34, 1
    %s36 = scalar_select %p33, %s34, %s35
    %p39 = pneg %p33
    %p40 = scmp.eq.s32.totalorder %s12, 1
    %p41 = por %p39, %p40
    %p42 = scmp.ne.s32.totalorder %s34, %s37
    %p43 = scmp.eq.s32.totalorder %s12, 0
    %p44 = por %p42, %p43
    %p45 = scmp.ne.s32.totalorder %s34, %s37
    %p46 = scmp.eq.s32.totalorder %s17, 1
    %p47 = por %p45, %p46
    %p48 = scmp.ne.s32.totalorder %s37, %s38
    %p49 = scmp.eq.s32.totalorder %s17, 0
    %p50 = por %p48, %p49
    %p51 = scmp.ne.s32.totalorder %s37, %s38
    %p52 = scmp.eq.s32.totalorder %s18, 1
    %p53 = por %p51, %p52
    %p55 = scmp.ne.s32.totalorder %s38, %s54
    %p56 = scmp.eq.s32.totalorder %s18, 0
    %p57 = por %p55, %p56
    %s59 = sadd.s32 %s58, 1
    %p62 = scmp.eq.s32.totalorder %s12, 1
    %p63 = scmp.ne.s32.totalorder %s58, %s60
    %p64 = scmp.eq.s32.totalorder %s12, 0
    %p65 = por %p63, %p64
    %p66 = scmp.ne.s32.totalorder %s58, %s60
    %p67 = scmp.eq.s32.totalorder %s17, 1
    %p68 = por %p66, %p67
    %p69 = scmp.ne.s32.totalorder %s60, %s61
    %p70 = scmp.eq.s32.totalorder %s17, 0
    %p71 = por %p69, %p70
    %p72 = scmp.ne.s32.totalorder %s60, %s61
    %p73 = scmp.eq.s32.totalorder %s18, 1
    %p74 = por %p72, %p73
    %p76 = scmp.ne.s32.totalorder %s61, %s75
    %p77 = scmp.eq.s32.totalorder %s18, 0
    %p78 = por %p76, %p77
    %s79 = ssub.s32 %s20, %s27
    %p80 = scmp.eq.s32.totalorder %s79, 0
    %s82 = sadd.s32 %s81, 1
    %s83 = scalar_select %p80, %s81, %s82
    %p86 = pneg %p80
    %p87 = scmp.eq.s32.totalorder %s12, 1
    %p88 = por %p86, %p87
    %p89 = scmp.ne.s32.totalorder %s81, %s84
    %p90 = scmp.eq.s32.totalorder %s12, 0
    %p91 = por %p89, %p90
    %p92 = scmp.ne.s32.totalorder %s81, %s84
    %p93 = scmp.eq.s32.totalorder %s17, 1
    %p94 = por %p92, %p93
    %p95 = scmp.ne.s32.totalorder %s84, %s85
    %p96 = scmp.eq.s32.totalorder %s17, 0
    %p97 = por %p95, %p96
    %p98 = scmp.ne.s32.totalorder %s84, %s85
    %p99 = scmp.eq.s32.totalorder %s18, 1
    %p100 = por %p98, %p99
    %p102 = scmp.ne.s32.totalorder %s85, %s101
    %p103 = scmp.eq.s32.totalorder %s18, 0
    %p104 = por %p102, %p103
    %s105 = ssub.s32 %s19, %s31
    %s106 = ssub.s32 %s20, %s27
    %s107 = sor.u32 %s105, %s106
    %p108 = scmp.eq.s32.totalorder %s107, 0
    %s110 = sadd.s32 %s109, 1
    %s111 = scalar_select %p108, %s109, %s110
    %p114 = pneg %p108
    %p115 = scmp.eq.s32.totalorder %s12, 1
    %p116 = por %p114, %p115
    %p117 = scmp.ne.s32.totalorder %s109, %s112
    %p118 = scmp.eq.s32.totalorder %s12, 0
    %p119 = por %p117, %p118
    %p120 = scmp.ne.s32.totalorder %s109, %s112
    %p121 = scmp.eq.s32.totalorder %s17, 1
    %p122 = por %p120, %p121
    %p123 = scmp.ne.s32.totalorder %s112, %s113
    %p124 = scmp.eq.s32.totalorder %s17, 0
    %p125 = por %p123, %p124
    %p126 = scmp.ne.s32.totalorder %s112, %s113
    %p127 = scmp.eq.s32.totalorder %s18, 1
    %p128 = por %p126, %p127
    %p130 = scmp.ne.s32.totalorder %s113, %s129
    %p131 = scmp.eq.s32.totalorder %s18, 0
    %p132 = por %p130, %p131
    %s133 = ssub.s32 %s19, %s31
    %s134 = ssub.s32 %s20, %s27
    %s135 = sor.u32 %s133, %s134
    %p136 = scmp.eq.s32.totalorder %s135, 0
    %s138 = sadd.s32 %s137, 1
    %s139 = scalar_select %p136, %s137, %s138
    %p142 = pneg %p136
    %p143 = scmp.eq.s32.totalorder %s12, 1
    %p144 = por %p142, %p143
    %p145 = scmp.ne.s32.totalorder %s137, %s140
    %p146 = scmp.eq.s32.totalorder %s12, 0
    %p147 = por %p145, %p146
    %p148 = scmp.ne.s32.totalorder %s137, %s140
    %p149 = scmp.eq.s32.totalorder %s17, 1
    %p150 = por %p148, %p149
    %p151 = scmp.ne.s32.totalorder %s140, %s141
    %p152 = scmp.eq.s32.totalorder %s17, 0
    %p153 = por %p151, %p152
    %p154 = scmp.ne.s32.totalorder %s140, %s141
    %p155 = scmp.eq.s32.totalorder %s18, 1
    %p156 = por %p154, %p155
    %p158 = scmp.ne.s32.totalorder %s141, %s157
    %p159 = scmp.eq.s32.totalorder %s18, 0
    %p160 = por %p158, %p159
    %s161 = ssub.s32 %s19, %s31
    %s162 = ssub.s32 %s20, %s27
    %s163 = sor.u32 %s161, %s162
    %p164 = scmp.eq.s32.totalorder %s163, 0
    %s166 = sadd.s32 %s165, 1
    %s167 = scalar_select %p164, %s165, %s166
    %p170 = pneg %p164
    %p171 = scmp.eq.s32.totalorder %s12, 1
    %p172 = por %p170, %p171
    %p173 = scmp.ne.s32.totalorder %s165, %s168
    %p174 = scmp.eq.s32.totalorder %s12, 0
    %p175 = por %p173, %p174
    %p176 = scmp.ne.s32.totalorder %s165, %s168
    %p177 = scmp.eq.s32.totalorder %s17, 1
    %p178 = por %p176, %p177
    %p179 = scmp.ne.s32.totalorder %s168, %s169
    %p180 = scmp.eq.s32.totalorder %s17, 0
    %p181 = por %p179, %p180
    %p182 = scmp.ne.s32.totalorder %s168, %s169
    %p183 = scmp.eq.s32.totalorder %s18, 1
    %p184 = por %p182, %p183
    %p186 = scmp.ne.s32.totalorder %s169, %s185
    %p187 = scmp.eq.s32.totalorder %s18, 0
    %p188 = por %p186, %p187
    %p189 = scmp.le.s32.totalorder 1, %s12
    %p190 = scmp.lt.s32.totalorder %s12, 3
    %p191 = pnand %p189, %p190
    %p192 = pneg %p191
    // Predicated region
    $region9: #{basic_conv2d.2} parent=5 // pred_check
      _
    $region10: #{basic_conv2d.2} parent=5 // pred_check_branch
      %194 = sbr.rel (%p191) target = $region12
    $region11: #{basic_conv2d.2} parent=5 // pred_region
      %s195 = ssub.s32 %s12, 1
      // Predicated region
      $region13: #{basic_conv2d.2} parent=11 // pred_check
        %p196 = pneg %p50
      $region14: #{basic_conv2d.2} parent=11 // pred_check_branch
        %198 = sbr.rel (%p196) target = $region16
      $region15: #{basic_conv2d.2} parent=11 // pred_region
        %p199 = scmp.lt.s32.totalorder %s21, 1
        %s200 = scalar_select %p199, %s21, 1
        %s201 = smul.addr %s200, 4
        %s202 = smul.addr %s201, 8
        %s203 = scalar_lea.vmem %s0, %s202
      $region16: #{basic_conv2d.2} parent=11 // pred_fallthru
        _
      // Predicated region
      $region17: #{basic_conv2d.2} parent=11 // pred_check
        %p204 = pneg %p71
      $region18: #{basic_conv2d.2} parent=11 // pred_check_branch
        %206 = sbr.rel (%p204) target = $region20
      $region19: #{basic_conv2d.2} parent=11 // pred_region
        _
      $region20: #{basic_conv2d.2} parent=11 // pred_fallthru
        _
      // Predicated region
      $region21: #{basic_conv2d.2} parent=11 // pred_check
        %p207 = pneg %p97
      $region22: #{basic_conv2d.2} parent=11 // pred_check_branch
        %209 = sbr.rel (%p207) target = $region24
      $region23: #{basic_conv2d.2} parent=11 // pred_region
        %s210 = smul.u32 3, %s22
        %p211 = scmp.lt.s32.totalorder %s210, 2
        %s212 = scalar_select %p211, %s210, 2
        %s213 = scalar_lea.vmem %s2, %s212
        %s214 = smul.u32 3, %s22
      $region24: #{basic_conv2d.2} parent=11 // pred_fallthru
        _
    $region12: #{basic_conv2d.2} parent=5 // pred_fallthru
      _
    %p215 = scmp.lt.s32.totalorder %s12, 2
    // Predicated region
    $region25: #{basic_conv2d.2} parent=5 // pred_check
      %p216 = pneg %p215
    $region26: #{basic_conv2d.2} parent=5 // pred_check_branch
      %218 = sbr.rel (%p216) target = $region28
    $region27: #{basic_conv2d.2} parent=5 // pred_region
      _
    $region28: #{basic_conv2d.2} parent=5 // pred_fallthru
      _
    %p219 = scmp.le.s32.totalorder 1, %s12
    %p220 = scmp.lt.s32.totalorder %s12, 3
    %p221 = pnand %p219, %p220
    %p222 = pneg %p221
    // Predicated region
    $region29: #{basic_conv2d.2} parent=5 // pred_check
      _
    $region30: #{basic_conv2d.2} parent=5 // pred_check_branch
      %224 = sbr.rel (%p221) target = $region32
    $region31: #{basic_conv2d.2} parent=5 // pred_region
      %s225 = ssub.s32 %s12, 1
      %p226 = scmp.lt.s32.totalorder %s21, 1
      %s227 = scalar_select %p226, %s21, 1
      %s228 = smul.addr %s227, 4
      %s229 = smul.addr %s228, 8
      %s230 = scalar_lea.vmem %s0, %s229
      %p231 = pneg %p50
      %p232 = pneg %p47
      %p233 = pneg %p71
      %p234 = pneg %p68
      %s235 = smul.u32 3, %s22
      %p236 = scmp.lt.s32.totalorder %s235, 2
      %s237 = scalar_select %p236, %s235, 2
      %s238 = scalar_lea.vmem %s2, %s237
      %p239 = pneg %p97
      %p240 = pneg %p94
      %p241 = pneg %p125
      %p242 = pneg %p122
      %s243 = smul.u32 3, %s22
      %p244 = scmp.lt.s32.totalorder %s21, 1
      %s245 = scalar_select %p244, %s21, 1
      %p246 = scmp.lt.s32.totalorder %s243, 2
      %s247 = scalar_select %p246, %s243, 2
      %s248 = smul.addr %s245, 3
      %s249 = sadd.s32 %s247, %s248
      %s250 = smul.addr %s249, 8
      %s251 = scalar_lea.vmem %s3, %s250
      %p252 = pneg %p153
      %p253 = pneg %p150
      %p254 = scmp.lt.s32.totalorder %s21, 1
      %s255 = scalar_select %p254, %s21, 1
      %p256 = scmp.lt.s32.totalorder %s22, 0
      %s257 = scalar_select %p256, %s22, 0
      %s258 = sadd.s32 %s257, %s255
      %s259 = scalar_lea.vmem %s4, %s258
      %p260 = pneg %p181
      %p261 = pneg %p178
      %p262 = scmp.lt.s32.totalorder %s21, 1
      %s263 = scalar_select %p262, %s21, 1
      %p264 = scmp.lt.s32.totalorder %s22, 0
      %s265 = scalar_select %p264, %s22, 0
      %s266 = sadd.s32 %s265, %s263
      %s267 = scalar_lea.vmem %s5, %s266
      %p268 = scmp.lt.s32.totalorder %s21, 1
      %s269 = scalar_select %p268, %s21, 1
      %s270 = smul.addr %s269, 4
      %s271 = smul.addr %s270, 8
      %s272 = scalar_lea.vmem %s0, %s271
      %s273 = smul.u32 3, %s22
      %p274 = scmp.lt.s32.totalorder %s273, 2
      %s275 = scalar_select %p274, %s273, 2
      %s276 = scalar_lea.vmem %s2, %s275
      %s277 = smul.u32 3, %s22
      %s278 = smul.u32 3, %s22
      %p279 = scmp.lt.s32.totalorder %s21, 1
      %s280 = scalar_select %p279, %s21, 1
      %p281 = scmp.lt.s32.totalorder %s278, 2
      %s282 = scalar_select %p281, %s278, 2
      %s283 = smul.addr %s280, 3
      %s284 = sadd.s32 %s282, %s283
      %s285 = smul.addr %s284, 8
      %s286 = scalar_lea.vmem %s3, %s285
      %s287 = smul.u32 3, %s22
      %p288 = scmp.lt.s32.totalorder %s21, 1
      %s289 = scalar_select %p288, %s21, 1
      %p290 = scmp.lt.s32.totalorder %s22, 0
      %s291 = scalar_select %p290, %s22, 0
      %s292 = sadd.s32 %s291, %s289
      %s293 = scalar_lea.vmem %s4, %s292
      %p294 = scmp.lt.s32.totalorder %s21, 1
      %s295 = scalar_select %p294, %s21, 1
      %p296 = scmp.lt.s32.totalorder %s22, 0
      %s297 = scalar_select %p296, %s22, 0
      %s298 = sadd.s32 %s297, %s295
      %s299 = scalar_lea.vmem %s5, %s298
      %s300 = smul.u32 %s22, 384
      %s301 = sshra.s32 %s300, 7
      %s302 = sand.u32 %s300, 127
      %s303 = smul.addr %s301, 8
      %s304 = scalar_lea.vmem %s272, %s303
      %v305 = vld [vmem:[%s304] sm:$0xff]
      %v306 = vld [vmem:[%s304 + $0x8] sm:$0xff]
      %v307 = vld [vmem:[%s304 + $0x10] sm:$0xff]
      %v308 = vld [vmem:[%s304 + $0x18] sm:$0xff]
      %313 = vrot.lane.b32.xlu0 %v305, 127
      %v314 = vpop.permute.xlu0 %313
      %315 = vrot.lane.b32.xlu0 %v306, 127
      %v316 = vpop.permute.xlu0 %315
      %317 = vrot.lane.b32.xlu0 %v307, 127
      %v318 = vpop.permute.xlu0 %317
      %319 = vrot.lane.b32.xlu0 %v308, 127
      %v320 = vpop.permute.xlu0 %319
      %vm321 = vcmask 1039360
      %v322 = vsel %vm321, %v314, %v316
      %v323 = vsel %vm321, %v316, %v318
      %v324 = vsel %vm321, %v318, %v320
      %328 = vrot.lane.b32.xlu0 %v305, 126
      %v329 = vpop.permute.xlu0 %328
      %330 = vrot.lane.b32.xlu0 %v306, 126
      %v331 = vpop.permute.xlu0 %330
      %332 = vrot.lane.b32.xlu0 %v307, 126
      %v333 = vpop.permute.xlu0 %332
      %334 = vrot.lane.b32.xlu0 %v308, 126
      %v335 = vpop.permute.xlu0 %334
      %vm336 = vcmask 1031168
      %v337 = vsel %vm336, %v329, %v331
      %v338 = vsel %vm336, %v331, %v333
      %v339 = vsel %vm336, %v333, %v335
      %343 = vrot.lane.b32.xlu0 %v305, 110
      %v344 = vpop.permute.xlu0 %343
      %345 = vrot.lane.b32.xlu0 %v306, 110
      %v346 = vpop.permute.xlu0 %345
      %347 = vrot.lane.b32.xlu0 %v307, 110
      %v348 = vpop.permute.xlu0 %347
      %349 = vrot.lane.b32.xlu0 %v308, 110
      %v350 = vpop.permute.xlu0 %349
      %vm351 = vcmask 900096
      %v352 = vsel %vm351, %v344, %v346
      %v353 = vsel %vm351, %v346, %v348
      %v354 = vsel %vm351, %v348, %v350
      %358 = vrot.lane.b32.xlu0 %v305, 109
      %v359 = vpop.permute.xlu0 %358
      %360 = vrot.lane.b32.xlu0 %v306, 109
      %v361 = vpop.permute.xlu0 %360
      %362 = vrot.lane.b32.xlu0 %v307, 109
      %v363 = vpop.permute.xlu0 %362
      %364 = vrot.lane.b32.xlu0 %v308, 109
      %v365 = vpop.permute.xlu0 %364
      %vm366 = vcmask 891904
      %v367 = vsel %vm366, %v359, %v361
      %v368 = vsel %vm366, %v361, %v363
      %v369 = vsel %vm366, %v363, %v365
      %373 = vrot.lane.b32.xlu0 %v305, 108
      %v374 = vpop.permute.xlu0 %373
      %375 = vrot.lane.b32.xlu0 %v306, 108
      %v376 = vpop.permute.xlu0 %375
      %377 = vrot.lane.b32.xlu0 %v307, 108
      %v378 = vpop.permute.xlu0 %377
      %379 = vrot.lane.b32.xlu0 %v308, 108
      %v380 = vpop.permute.xlu0 %379
      %vm381 = vcmask 883712
      %v382 = vsel %vm381, %v374, %v376
      %v383 = vsel %vm381, %v376, %v378
      %v384 = vsel %vm381, %v378, %v380
      %388 = vrot.lane.b32.xlu0 %v305, 92
      %v389 = vpop.permute.xlu0 %388
      %390 = vrot.lane.b32.xlu0 %v306, 92
      %v391 = vpop.permute.xlu0 %390
      %392 = vrot.lane.b32.xlu0 %v307, 92
      %v393 = vpop.permute.xlu0 %392
      %394 = vrot.lane.b32.xlu0 %v308, 92
      %v395 = vpop.permute.xlu0 %394
      %vm396 = vcmask 752640
      %v397 = vsel %vm396, %v389, %v391
      %v398 = vsel %vm396, %v391, %v393
      %v399 = vsel %vm396, %v393, %v395
      %403 = vrot.lane.b32.xlu0 %v305, 91
      %v404 = vpop.permute.xlu0 %403
      %405 = vrot.lane.b32.xlu0 %v306, 91
      %v406 = vpop.permute.xlu0 %405
      %407 = vrot.lane.b32.xlu0 %v307, 91
      %v408 = vpop.permute.xlu0 %407
      %409 = vrot.lane.b32.xlu0 %v308, 91
      %v410 = vpop.permute.xlu0 %409
      %vm411 = vcmask 744448
      %v412 = vsel %vm411, %v404, %v406
      %v413 = vsel %vm411, %v406, %v408
      %v414 = vsel %vm411, %v408, %v410
      %418 = vrot.lane.b32.xlu0 %v305, 90
      %v419 = vpop.permute.xlu0 %418
      %420 = vrot.lane.b32.xlu0 %v306, 90
      %v421 = vpop.permute.xlu0 %420
      %422 = vrot.lane.b32.xlu0 %v307, 90
      %v423 = vpop.permute.xlu0 %422
      %424 = vrot.lane.b32.xlu0 %v308, 90
      %v425 = vpop.permute.xlu0 %424
      %vm426 = vcmask 736256
      %v427 = vsel %vm426, %v419, %v421
      %v428 = vsel %vm426, %v421, %v423
      %v429 = vsel %vm426, %v423, %v425
      %v433 = vld [vmem:[%s1] sm:$0xff]
      %vm434 = vcmask 588800
      %v436 = vsel %vm434, %v433, 0
      %438 = vmatprep.subr.mxu0 %v306
      %439 = vmatpush1.msra.mxu0 %v305
      %440 = vmatprep.subr.mxu0 %v323
      %441 = vmatpush1.msra.mxu0 %v322
      %442 = vmatprep.subr.mxu0 %v338
      %443 = vmatpush1.msra.mxu0 %v337
      %444 = vmatprep.subr.mxu0 %v353
      %445 = vmatpush1.msra.mxu0 %v352
      %446 = vmatprep.subr.mxu0 %v368
      %447 = vmatpush1.msra.mxu0 %v367
      %448 = vmatprep.subr.mxu0 %v383
      %449 = vmatpush1.msra.mxu0 %v382
      %450 = vmatprep.subr.mxu0 %v398
      %451 = vmatpush1.msra.mxu0 %v397
      %452 = vmatprep.subr.mxu0 %v413
      %453 = vmatpush1.msra.mxu0 %v412
      %454 = vmatprep.subr.mxu0 %v428
      %455 = vmatpush1.msra.mxu0 %v427
      %456 = vmatprep.subr.mxu0 0.0
      %457 = vmatpush1.msra.mxu0 0.0
      %458 = vmatprep.subr.mxu0 0.0
      %459 = vmatpush1.msra.mxu0 0.0
      %460 = vmatprep.subr.mxu0 0.0
      %461 = vmatpush1.msra.mxu0 0.0
      %462 = vmatprep.subr.mxu0 0.0
      %463 = vmatpush1.msra.mxu0 0.0
      %464 = vmatprep.subr.mxu0 0.0
      %465 = vmatpush1.msra.mxu0 0.0
      %466 = vmatprep.subr.mxu0 0.0
      %467 = vmatpush1.msra.mxu0 0.0
      %468 = vmatprep.subr.mxu0 0.0
      %469 = vmatpush1.msra.mxu0 0.0
      %470 = vmatprep.subr.mxu0 0.0
      %471 = vmatpush1.msra.mxu0 0.0
      %472 = vmatprep.subr.mxu0 0.0
      %473 = vmatpush1.msra.mxu0 0.0
      %474 = vmatprep.subr.mxu0 0.0
      %475 = vmatpush1.msra.mxu0 0.0
      %476 = vmatprep.subr.mxu0 0.0
      %477 = vmatpush1.msra.mxu0 0.0
      %478 = vmatprep.subr.mxu0 0.0
      %479 = vmatpush1.msra.mxu0 0.0
      %480 = vmatprep.subr.mxu0 0.0
      %481 = vmatpush1.msra.mxu0 0.0
      %482 = vmatprep.subr.mxu0 0.0
      %483 = vmatpush1.msra.mxu0 0.0
      %484 = vmatprep.subr.mxu0 0.0
      %485 = vmatpush1.msra.mxu0 0.0
      %486 = vmatprep.subr.mxu0 0.0
      %487 = vmatpush1.msra.mxu0 0.0
      %488 = vmatprep.subr.mxu0 0.0
      %489 = vmatpush1.msra.mxu0 0.0
      %490 = vmatprep.subr.mxu0 0.0
      %491 = vmatpush1.msra.mxu0 0.0
      %492 = vmatprep.subr.mxu0 0.0
      %493 = vmatpush1.msra.mxu0 0.0
      %494 = vmatprep.subr.mxu0 0.0
      %495 = vmatpush1.msra.mxu0 0.0
      %496 = vmatprep.subr.mxu0 0.0
      %497 = vmatpush1.msra.mxu0 0.0
      %498 = vmatprep.subr.mxu0 0.0
      %499 = vmatpush1.msra.mxu0 0.0
      %500 = vmatprep.subr.mxu0 0.0
      %501 = vmatpush1.msra.mxu0 0.0
      %502 = vmatprep.mubr.f32.mxu0 0.0
      %503 = vmatmul.mubr.f32.gmra.mrb[0].mxu0 %v436
      %v504 = vpop.f32.mrb[0].mxu0
      %v505 = vadd.f32 0.0, %v504
      %v506 = vpop.f32.mrb[0].mxu0
      %v507 = vadd.f32 0.0, %v506
      %508 = vdwg.mxu0
      %509 = vmatprep.subr.mxu0 0.0
      %510 = vmatpush1.msra.mxu0 %v307
      %511 = vmatprep.subr.mxu0 0.0
      %512 = vmatpush1.msra.mxu0 %v324
      %513 = vmatprep.subr.mxu0 0.0
      %514 = vmatpush1.msra.mxu0 %v339
      %515 = vmatprep.subr.mxu0 0.0
      %516 = vmatpush1.msra.mxu0 %v354
      %517 = vmatprep.subr.mxu0 0.0
      %518 = vmatpush1.msra.mxu0 %v369
      %519 = vmatprep.subr.mxu0 0.0
      %520 = vmatpush1.msra.mxu0 %v384
      %521 = vmatprep.subr.mxu0 0.0
      %522 = vmatpush1.msra.mxu0 %v399
      %523 = vmatprep.subr.mxu0 0.0
      %524 = vmatpush1.msra.mxu0 %v414
      %525 = vmatprep.subr.mxu0 0.0
      %526 = vmatpush1.msra.mxu0 %v429
      %527 = vmatprep.subr.mxu0 0.0
      %528 = vmatpush1.msra.mxu0 0.0
      %529 = vmatprep.subr.mxu0 0.0
      %530 = vmatpush1.msra.mxu0 0.0
      %531 = vmatprep.subr.mxu0 0.0
      %532 = vmatpush1.msra.mxu0 0.0
      %533 = vmatprep.subr.mxu0 0.0
      %534 = vmatpush1.msra.mxu0 0.0
      %535 = vmatprep.subr.mxu0 0.0
      %536 = vmatpush1.msra.mxu0 0.0
      %537 = vmatprep.subr.mxu0 0.0
      %538 = vmatpush1.msra.mxu0 0.0
      %539 = vmatprep.subr.mxu0 0.0
      %540 = vmatpush1.msra.mxu0 0.0
      %541 = vmatprep.subr.mxu0 0.0
      %542 = vmatpush1.msra.mxu0 0.0
      %543 = vmatprep.subr.mxu0 0.0
      %544 = vmatpush1.msra.mxu0 0.0
      %545 = vmatprep.subr.mxu0 0.0
      %546 = vmatpush1.msra.mxu0 0.0
      %547 = vmatprep.subr.mxu0 0.0
      %548 = vmatpush1.msra.mxu0 0.0
      %549 = vmatprep.subr.mxu0 0.0
      %550 = vmatpush1.msra.mxu0 0.0
      %551 = vmatprep.subr.mxu0 0.0
      %552 = vmatpush1.msra.mxu0 0.0
      %553 = vmatprep.subr.mxu0 0.0
      %554 = vmatpush1.msra.mxu0 0.0
      %555 = vmatprep.subr.mxu0 0.0
      %556 = vmatpush1.msra.mxu0 0.0
      %557 = vmatprep.subr.mxu0 0.0
      %558 = vmatpush1.msra.mxu0 0.0
      %559 = vmatprep.subr.mxu0 0.0
      %560 = vmatpush1.msra.mxu0 0.0
      %561 = vmatprep.subr.mxu0 0.0
      %562 = vmatpush1.msra.mxu0 0.0
      %563 = vmatprep.subr.mxu0 0.0
      %564 = vmatpush1.msra.mxu0 0.0
      %565 = vmatprep.subr.mxu0 0.0
      %566 = vmatpush1.msra.mxu0 0.0
      %567 = vmatprep.subr.mxu0 0.0
      %568 = vmatpush1.msra.mxu0 0.0
      %569 = vmatprep.subr.mxu0 0.0
      %570 = vmatpush1.msra.mxu0 0.0
      %571 = vmatprep.subr.mxu0 0.0
      %572 = vmatpush1.msra.mxu0 0.0
      %573 = vmatprep.mubr.f32.mxu0 0.0
      %574 = vmatmul.mubr.f32.gmra.mrb[0].mxu0 %v436
      %v575 = vpop.f32.mrb[0].mxu0
      %v576 = vadd.f32 0.0, %v575
      %v577 = vpop.f32.mrb[0].mxu0
      %578 = vdwg.mxu0
      %579 = vst [vmem:[%s286] sm:$0xff] %v505
      %580 = vst [vmem:[%s286 + $0x8] sm:$0xff] %v507
      %581 = vst [vmem:[%s286 + $0x10] sm:$0xff] %v576
      %v582 = vld [vmem:[%s276] sm:$0x7]
      %v584 = vlaneseq
      %v585 = vshrl.u32 %v584, 7
      %v586 = vsub.s32 0, %v585
      %v587 = vrot.slane %v582, %v586
      %v588 = vlaneseq
      %v589 = vshrl.u32 %v588, 7
      %v590 = vsub.s32 1, %v589
      %v591 = vrot.slane %v582, %v590
      %v592 = vlaneseq
      %v593 = vshrl.u32 %v592, 7
      %v594 = vsub.s32 2, %v593
      %v595 = vrot.slane %v582, %v594
      %599 = vmatprep.subr.mxu0 %v507
      %600 = vmatpush1.xpose.msra.mxu0 %v505
      %601 = vmatprep.subr.mxu0 0.0
      %602 = vmatpush1.xpose.msra.mxu0 0.0
      %603 = vmatprep.subr.mxu0 0.0
      %604 = vmatpush1.xpose.msra.mxu0 0.0
      %605 = vmatprep.subr.mxu0 0.0
      %606 = vmatpush1.xpose.msra.mxu0 0.0
      %607 = vmatprep.subr.mxu0 0.0
      %608 = vmatpush1.xpose.msra.mxu0 0.0
      %609 = vmatprep.subr.mxu0 0.0
      %610 = vmatpush1.xpose.msra.mxu0 0.0
      %611 = vmatprep.subr.mxu0 0.0
      %612 = vmatpush1.xpose.msra.mxu0 0.0
      %613 = vmatprep.subr.mxu0 0.0
      %614 = vmatpush1.xpose.msra.mxu0 0.0
      %615 = vmatprep.subr.mxu0 0.0
      %616 = vmatpush1.xpose.msra.mxu0 0.0
      %617 = vmatprep.subr.mxu0 0.0
      %618 = vmatpush1.xpose.msra.mxu0 0.0
      %619 = vmatprep.subr.mxu0 0.0
      %620 = vmatpush1.xpose.msra.mxu0 0.0
      %621 = vmatprep.subr.mxu0 0.0
      %622 = vmatpush1.xpose.msra.mxu0 0.0
      %623 = vmatprep.subr.mxu0 0.0
      %624 = vmatpush1.xpose.msra.mxu0 0.0
      %625 = vmatprep.subr.mxu0 0.0
      %626 = vmatpush1.xpose.msra.mxu0 0.0
      %627 = vmatprep.subr.mxu0 0.0
      %628 = vmatpush1.xpose.msra.mxu0 0.0
      %629 = vmatprep.subr.mxu0 0.0
      %630 = vmatpush1.xpose.msra.mxu0 0.0
      %631 = vmatprep.subr.mxu0 0.0
      %632 = vmatpush1.xpose.msra.mxu0 0.0
      %633 = vmatprep.subr.mxu0 0.0
      %634 = vmatpush1.xpose.msra.mxu0 0.0
      %635 = vmatprep.subr.mxu0 0.0
      %636 = vmatpush1.xpose.msra.mxu0 0.0
      %637 = vmatprep.subr.mxu0 0.0
      %638 = vmatpush1.xpose.msra.mxu0 0.0
      %639 = vmatprep.subr.mxu0 0.0
      %640 = vmatpush1.xpose.msra.mxu0 0.0
      %641 = vmatprep.subr.mxu0 0.0
      %642 = vmatpush1.xpose.msra.mxu0 0.0
      %643 = vmatprep.subr.mxu0 0.0
      %644 = vmatpush1.xpose.msra.mxu0 0.0
      %645 = vmatprep.subr.mxu0 0.0
      %646 = vmatpush1.xpose.msra.mxu0 0.0
      %647 = vmatprep.subr.mxu0 0.0
      %648 = vmatpush1.xpose.msra.mxu0 0.0
      %649 = vmatprep.subr.mxu0 0.0
      %650 = vmatpush1.xpose.msra.mxu0 0.0
      %651 = vmatprep.subr.mxu0 0.0
      %652 = vmatpush1.xpose.msra.mxu0 0.0
      %653 = vmatprep.subr.mxu0 0.0
      %654 = vmatpush1.xpose.msra.mxu0 0.0
      %655 = vmatprep.subr.mxu0 0.0
      %656 = vmatpush1.xpose.msra.mxu0 0.0
      %657 = vmatprep.subr.mxu0 0.0
      %658 = vmatpush1.xpose.msra.mxu0 0.0
      %659 = vmatprep.subr.mxu0 0.0
      %660 = vmatpush1.xpose.msra.mxu0 0.0
      %661 = vmatprep.subr.mxu0 0.0
      %662 = vmatpush1.xpose.msra.mxu0 0.0
      %663 = vmatprep.mubr.f32.mxu0 %v591
      %664 = vmatmul.mubr.f32.gmra.mrb[0].mxu0 %v587
      %v665 = vpop.f32.mrb[0].mxu0
      %v666 = vadd.f32 0.0, %v665
      %v667 = vpop.f32.mrb[0].mxu0
      %668 = vdwg.mxu0
      %669 = vmatprep.subr.mxu0 0.0
      %670 = vmatpush1.xpose.msra.mxu0 %v576
      %671 = vmatprep.subr.mxu0 0.0
      %672 = vmatpush1.xpose.msra.mxu0 0.0
      %673 = vmatprep.subr.mxu0 0.0
      %674 = vmatpush1.xpose.msra.mxu0 0.0
      %675 = vmatprep.subr.mxu0 0.0
      %676 = vmatpush1.xpose.msra.mxu0 0.0
      %677 = vmatprep.subr.mxu0 0.0
      %678 = vmatpush1.xpose.msra.mxu0 0.0
      %679 = vmatprep.subr.mxu0 0.0
      %680 = vmatpush1.xpose.msra.mxu0 0.0
      %681 = vmatprep.subr.mxu0 0.0
      %682 = vmatpush1.xpose.msra.mxu0 0.0
      %683 = vmatprep.subr.mxu0 0.0
      %684 = vmatpush1.xpose.msra.mxu0 0.0
      %685 = vmatprep.subr.mxu0 0.0
      %686 = vmatpush1.xpose.msra.mxu0 0.0
      %687 = vmatprep.subr.mxu0 0.0
      %688 = vmatpush1.xpose.msra.mxu0 0.0
      %689 = vmatprep.subr.mxu0 0.0
      %690 = vmatpush1.xpose.msra.mxu0 0.0
      %691 = vmatprep.subr.mxu0 0.0
      %692 = vmatpush1.xpose.msra.mxu0 0.0
      %693 = vmatprep.subr.mxu0 0.0
      %694 = vmatpush1.xpose.msra.mxu0 0.0
      %695 = vmatprep.subr.mxu0 0.0
      %696 = vmatpush1.xpose.msra.mxu0 0.0
      %697 = vmatprep.subr.mxu0 0.0
      %698 = vmatpush1.xpose.msra.mxu0 0.0
      %699 = vmatprep.subr.mxu0 0.0
      %700 = vmatpush1.xpose.msra.mxu0 0.0
      %701 = vmatprep.subr.mxu0 0.0
      %702 = vmatpush1.xpose.msra.mxu0 0.0
      %703 = vmatprep.subr.mxu0 0.0
      %704 = vmatpush1.xpose.msra.mxu0 0.0
      %705 = vmatprep.subr.mxu0 0.0
      %706 = vmatpush1.xpose.msra.mxu0 0.0
      %707 = vmatprep.subr.mxu0 0.0
      %708 = vmatpush1.xpose.msra.mxu0 0.0
      %709 = vmatprep.subr.mxu0 0.0
      %710 = vmatpush1.xpose.msra.mxu0 0.0
      %711 = vmatprep.subr.mxu0 0.0
      %712 = vmatpush1.xpose.msra.mxu0 0.0
      %713 = vmatprep.subr.mxu0 0.0
      %714 = vmatpush1.xpose.msra.mxu0 0.0
      %715 = vmatprep.subr.mxu0 0.0
      %716 = vmatpush1.xpose.msra.mxu0 0.0
      %717 = vmatprep.subr.mxu0 0.0
      %718 = vmatpush1.xpose.msra.mxu0 0.0
      %719 = vmatprep.subr.mxu0 0.0
      %720 = vmatpush1.xpose.msra.mxu0 0.0
      %721 = vmatprep.subr.mxu0 0.0
      %722 = vmatpush1.xpose.msra.mxu0 0.0
      %723 = vmatprep.subr.mxu0 0.0
      %724 = vmatpush1.xpose.msra.mxu0 0.0
      %725 = vmatprep.subr.mxu0 0.0
      %726 = vmatpush1.xpose.msra.mxu0 0.0
      %727 = vmatprep.subr.mxu0 0.0
      %728 = vmatpush1.xpose.msra.mxu0 0.0
      %729 = vmatprep.subr.mxu0 0.0
      %730 = vmatpush1.xpose.msra.mxu0 0.0
      %731 = vmatprep.subr.mxu0 0.0
      %732 = vmatpush1.xpose.msra.mxu0 0.0
      %733 = vmatprep.mubr.f32.mxu0 0.0
      %734 = vmatmul.mubr.f32.gmra.mrb[0].mxu0 %v595
      %v735 = vpop.f32.mrb[0].mxu0
      %v736 = vadd.f32 %v666, %v735
      %v737 = vpop.f32.mrb[0].mxu0
      %738 = vdwg.mxu0
      %vm739 = vcmask 57344
      %740 = vst.msk [vmem:[%s293] sm:$0x1] %vm739, %v736
      %v741 = vmul.f32 %v505, %v505
      %v742 = vmul.f32 %v507, %v507
      %v743 = vmul.f32 %v576, %v576
      %744 = vmatprep.subr.mxu0 %v742
      %745 = vmatpush1.xpose.msra.mxu0 %v741
      %746 = vmatprep.subr.mxu0 0.0
      %747 = vmatpush1.xpose.msra.mxu0 0.0
      %748 = vmatprep.subr.mxu0 0.0
      %749 = vmatpush1.xpose.msra.mxu0 0.0
      %750 = vmatprep.subr.mxu0 0.0
      %751 = vmatpush1.xpose.msra.mxu0 0.0
      %752 = vmatprep.subr.mxu0 0.0
      %753 = vmatpush1.xpose.msra.mxu0 0.0
      %754 = vmatprep.subr.mxu0 0.0
      %755 = vmatpush1.xpose.msra.mxu0 0.0
      %756 = vmatprep.subr.mxu0 0.0
      %757 = vmatpush1.xpose.msra.mxu0 0.0
      %758 = vmatprep.subr.mxu0 0.0
      %759 = vmatpush1.xpose.msra.mxu0 0.0
      %760 = vmatprep.subr.mxu0 0.0
      %761 = vmatpush1.xpose.msra.mxu0 0.0
      %762 = vmatprep.subr.mxu0 0.0
      %763 = vmatpush1.xpose.msra.mxu0 0.0
      %764 = vmatprep.subr.mxu0 0.0
      %765 = vmatpush1.xpose.msra.mxu0 0.0
      %766 = vmatprep.subr.mxu0 0.0
      %767 = vmatpush1.xpose.msra.mxu0 0.0
      %768 = vmatprep.subr.mxu0 0.0
      %769 = vmatpush1.xpose.msra.mxu0 0.0
      %770 = vmatprep.subr.mxu0 0.0
      %771 = vmatpush1.xpose.msra.mxu0 0.0
      %772 = vmatprep.subr.mxu0 0.0
      %773 = vmatpush1.xpose.msra.mxu0 0.0
      %774 = vmatprep.subr.mxu0 0.0
      %775 = vmatpush1.xpose.msra.mxu0 0.0
      %776 = vmatprep.subr.mxu0 0.0
      %777 = vmatpush1.xpose.msra.mxu0 0.0
      %778 = vmatprep.subr.mxu0 0.0
      %779 = vmatpush1.xpose.msra.mxu0 0.0
      %780 = vmatprep.subr.mxu0 0.0
      %781 = vmatpush1.xpose.msra.mxu0 0.0
      %782 = vmatprep.subr.mxu0 0.0
      %783 = vmatpush1.xpose.msra.mxu0 0.0
      %784 = vmatprep.subr.mxu0 0.0
      %785 = vmatpush1.xpose.msra.mxu0 0.0
      %786 = vmatprep.subr.mxu0 0.0
      %787 = vmatpush1.xpose.msra.mxu0 0.0
      %788 = vmatprep.subr.mxu0 0.0
      %789 = vmatpush1.xpose.msra.mxu0 0.0
      %790 = vmatprep.subr.mxu0 0.0
      %791 = vmatpush1.xpose.msra.mxu0 0.0
      %792 = vmatprep.subr.mxu0 0.0
      %793 = vmatpush1.xpose.msra.mxu0 0.0
      %794 = vmatprep.subr.mxu0 0.0
      %795 = vmatpush1.xpose.msra.mxu0 0.0
      %796 = vmatprep.subr.mxu0 0.0
      %797 = vmatpush1.xpose.msra.mxu0 0.0
      %798 = vmatprep.subr.mxu0 0.0
      %799 = vmatpush1.xpose.msra.mxu0 0.0
      %800 = vmatprep.subr.mxu0 0.0
      %801 = vmatpush1.xpose.msra.mxu0 0.0
      %802 = vmatprep.subr.mxu0 0.0
      %803 = vmatpush1.xpose.msra.mxu0 0.0
      %804 = vmatprep.subr.mxu0 0.0
      %805 = vmatpush1.xpose.msra.mxu0 0.0
      %806 = vmatprep.subr.mxu0 0.0
      %807 = vmatpush1.xpose.msra.mxu0 0.0
      %808 = vmatprep.mubr.f32.mxu0 %v591
      %809 = vmatmul.mubr.f32.gmra.mrb[0].mxu0 %v587
      %v810 = vpop.f32.mrb[0].mxu0
      %v811 = vadd.f32 0.0, %v810
      %v812 = vpop.f32.mrb[0].mxu0
      %813 = vdwg.mxu0
      %814 = vmatprep.subr.mxu0 0.0
      %815 = vmatpush1.xpose.msra.mxu0 %v743
      %816 = vmatprep.subr.mxu0 0.0
      %817 = vmatpush1.xpose.msra.mxu0 0.0
      %818 = vmatprep.subr.mxu0 0.0
      %819 = vmatpush1.xpose.msra.mxu0 0.0
      %820 = vmatprep.subr.mxu0 0.0
      %821 = vmatpush1.xpose.msra.mxu0 0.0
      %822 = vmatprep.subr.mxu0 0.0
      %823 = vmatpush1.xpose.msra.mxu0 0.0
      %824 = vmatprep.subr.mxu0 0.0
      %825 = vmatpush1.xpose.msra.mxu0 0.0
      %826 = vmatprep.subr.mxu0 0.0
      %827 = vmatpush1.xpose.msra.mxu0 0.0
      %828 = vmatprep.subr.mxu0 0.0
      %829 = vmatpush1.xpose.msra.mxu0 0.0
      %830 = vmatprep.subr.mxu0 0.0
      %831 = vmatpush1.xpose.msra.mxu0 0.0
      %832 = vmatprep.subr.mxu0 0.0
      %833 = vmatpush1.xpose.msra.mxu0 0.0
      %834 = vmatprep.subr.mxu0 0.0
      %835 = vmatpush1.xpose.msra.mxu0 0.0
      %836 = vmatprep.subr.mxu0 0.0
      %837 = vmatpush1.xpose.msra.mxu0 0.0
      %838 = vmatprep.subr.mxu0 0.0
      %839 = vmatpush1.xpose.msra.mxu0 0.0
      %840 = vmatprep.subr.mxu0 0.0
      %841 = vmatpush1.xpose.msra.mxu0 0.0
      %842 = vmatprep.subr.mxu0 0.0
      %843 = vmatpush1.xpose.msra.mxu0 0.0
      %844 = vmatprep.subr.mxu0 0.0
      %845 = vmatpush1.xpose.msra.mxu0 0.0
      %846 = vmatprep.subr.mxu0 0.0
      %847 = vmatpush1.xpose.msra.mxu0 0.0
      %848 = vmatprep.subr.mxu0 0.0
      %849 = vmatpush1.xpose.msra.mxu0 0.0
      %850 = vmatprep.subr.mxu0 0.0
      %851 = vmatpush1.xpose.msra.mxu0 0.0
      %852 = vmatprep.subr.mxu0 0.0
      %853 = vmatpush1.xpose.msra.mxu0 0.0
      %854 = vmatprep.subr.mxu0 0.0
      %855 = vmatpush1.xpose.msra.mxu0 0.0
      %856 = vmatprep.subr.mxu0 0.0
      %857 = vmatpush1.xpose.msra.mxu0 0.0
      %858 = vmatprep.subr.mxu0 0.0
      %859 = vmatpush1.xpose.msra.mxu0 0.0
      %860 = vmatprep.subr.mxu0 0.0
      %861 = vmatpush1.xpose.msra.mxu0 0.0
      %862 = vmatprep.subr.mxu0 0.0
      %863 = vmatpush1.xpose.msra.mxu0 0.0
      %864 = vmatprep.subr.mxu0 0.0
      %865 = vmatpush1.xpose.msra.mxu0 0.0
      %866 = vmatprep.subr.mxu0 0.0
      %867 = vmatpush1.xpose.msra.mxu0 0.0
      %868 = vmatprep.subr.mxu0 0.0
      %869 = vmatpush1.xpose.msra.mxu0 0.0
      %870 = vmatprep.subr.mxu0 0.0
      %871 = vmatpush1.xpose.msra.mxu0 0.0
      %872 = vmatprep.subr.mxu0 0.0
      %873 = vmatpush1.xpose.msra.mxu0 0.0
      %874 = vmatprep.subr.mxu0 0.0
      %875 = vmatpush1.xpose.msra.mxu0 0.0
      %876 = vmatprep.subr.mxu0 0.0
      %877 = vmatpush1.xpose.msra.mxu0 0.0
      %878 = vmatprep.mubr.f32.mxu0 0.0
      %879 = vmatmul.mubr.f32.gmra.mrb[0].mxu0 %v595
      %v880 = vpop.f32.mrb[0].mxu0
      %v881 = vadd.f32 %v811, %v880
      %v882 = vpop.f32.mrb[0].mxu0
      %883 = vdwg.mxu0
      %884 = vst.msk [vmem:[%s299] sm:$0x1] %vm739, %v881
      %s885 = smul.u32 3, %s22
      %p886 = scmp.lt.s32.totalorder %s21, 1
      %s887 = scalar_select %p886, %s21, 1
      %p888 = scmp.lt.s32.totalorder %s885, 2
      %s889 = scalar_select %p888, %s885, 2
      %s890 = smul.addr %s887, 3
      %s891 = sadd.s32 %s889, %s890
      %s892 = smul.addr %s891, 8
      %s893 = scalar_lea.vmem %s3, %s892
      %p894 = scmp.lt.s32.totalorder %s21, 1
      %s895 = scalar_select %p894, %s21, 1
      %p896 = scmp.lt.s32.totalorder %s22, 0
      %s897 = scalar_select %p896, %s22, 0
      %s898 = sadd.s32 %s897, %s895
      %s899 = scalar_lea.vmem %s4, %s898
      %p900 = scmp.lt.s32.totalorder %s21, 1
      %s901 = scalar_select %p900, %s21, 1
      %p902 = scmp.lt.s32.totalorder %s22, 0
      %s903 = scalar_select %p902, %s22, 0
      %s904 = sadd.s32 %s903, %s901
      %s905 = scalar_lea.vmem %s5, %s904
      // Predicated region
      $region33: #{basic_conv2d.2} parent=31 // pred_check
        %p906 = pneg %p122
      $region34: #{basic_conv2d.2} parent=31 // pred_check_branch
        %908 = sbr.rel (%p906) target = $region36
      $region35: #{basic_conv2d.2} parent=31 // pred_region
        %s909 = smul.u32 3, %s22
      $region36: #{basic_conv2d.2} parent=31 // pred_fallthru
        _
      // Predicated region
      $region37: #{basic_conv2d.2} parent=31 // pred_check
        %p910 = pneg %p150
      $region38: #{basic_conv2d.2} parent=31 // pred_check_branch
        %912 = sbr.rel (%p910) target = $region40
      $region39: #{basic_conv2d.2} parent=31 // pred_region
        _
      $region40: #{basic_conv2d.2} parent=31 // pred_fallthru
        _
      // Predicated region
      $region41: #{basic_conv2d.2} parent=31 // pred_check
        %p913 = pneg %p178
      $region42: #{basic_conv2d.2} parent=31 // pred_check_branch
        %915 = sbr.rel (%p913) target = $region44
      $region43: #{basic_conv2d.2} parent=31 // pred_region
        _
      $region44: #{basic_conv2d.2} parent=31 // pred_fallthru
        _
    $region32: #{basic_conv2d.2} parent=5 // pred_fallthru
      _
    %p916 = scmp.le.s32.totalorder 2, %s12
    // Predicated region
    $region45: #{basic_conv2d.2} parent=5 // pred_check
      %p917 = pneg %p916
    $region46: #{basic_conv2d.2} parent=5 // pred_check_branch
      %919 = sbr.rel (%p917) target = $region48
    $region47: #{basic_conv2d.2} parent=5 // pred_region
      %s920 = ssub.s32 %s12, 2
      // Predicated region
      $region49: #{basic_conv2d.2} parent=47 // pred_check
        %p921 = pneg %p128
      $region50: #{basic_conv2d.2} parent=47 // pred_check_branch
        %923 = sbr.rel (%p921) target = $region52
      $region51: #{basic_conv2d.2} parent=47 // pred_region
        %s924 = smul.u32 3, %s24
        %p925 = scmp.lt.s32.totalorder %s23, 1
        %s926 = scalar_select %p925, %s23, 1
        %p927 = scmp.lt.s32.totalorder %s924, 2
        %s928 = scalar_select %p927, %s924, 2
        %s929 = smul.addr %s926, 3
        %s930 = sadd.s32 %s928, %s929
        %s931 = smul.addr %s930, 8
        %s932 = scalar_lea.vmem %s3, %s931
      $region52: #{basic_conv2d.2} parent=47 // pred_fallthru
        _
      // Predicated region
      $region53: #{basic_conv2d.2} parent=47 // pred_check
        %p933 = pneg %p156
      $region54: #{basic_conv2d.2} parent=47 // pred_check_branch
        %935 = sbr.rel (%p933) target = $region56
      $region55: #{basic_conv2d.2} parent=47 // pred_region
        %p936 = scmp.lt.s32.totalorder %s23, 1
        %s937 = scalar_select %p936, %s23, 1
        %p938 = scmp.lt.s32.totalorder %s24, 0
        %s939 = scalar_select %p938, %s24, 0
        %s940 = sadd.s32 %s939, %s937
        %s941 = scalar_lea.vmem %s4, %s940
      $region56: #{basic_conv2d.2} parent=47 // pred_fallthru
        _
      // Predicated region
      $region57: #{basic_conv2d.2} parent=47 // pred_check
        %p942 = pneg %p184
      $region58: #{basic_conv2d.2} parent=47 // pred_check_branch
        %944 = sbr.rel (%p942) target = $region60
      $region59: #{basic_conv2d.2} parent=47 // pred_region
        %p945 = scmp.lt.s32.totalorder %s23, 1
        %s946 = scalar_select %p945, %s23, 1
        %p947 = scmp.lt.s32.totalorder %s24, 0
        %s948 = scalar_select %p947, %s24, 0
        %s949 = sadd.s32 %s948, %s946
        %s950 = scalar_lea.vmem %s5, %s949
      $region60: #{basic_conv2d.2} parent=47 // pred_fallthru
        _
    $region48: #{basic_conv2d.2} parent=5 // pred_fallthru
      _
  $region6: #{basic_conv2d.2} parent=0 // loop_footer
    %s16 = sadd.s32 1, %s12
  $region7: #{basic_conv2d.2} parent=0 // loop_footer_branch
    %11 = sbr.rel target = $region3
  $region8: #{basic_conv2d.2} parent=0 // loop_exit
    _

// kernel: basic_conv2d.3
$region0: #{basic_conv2d.3}
  #allocation0 [shape = 'u32[]', space=smem, size = 0x4, offset = 0x4, fixed_abs, tag = 'smem constant byte address 0x4 - core index']
  #allocation1 [shape = 'u32[144,128]{1,0:T(1,128)}', space=vmem, size = 0x12000, scoped, tag = 'internal scratch']
  %s0 = inlined_call_operand.vmem [shape: f32[2,8,384], index: 0, kind: input, shape index: {}]
  %s1 = inlined_call_operand.vmem [shape: f32[8,1], index: 1, kind: input, shape index: {}]
  %s2 = inlined_call_operand.vmem [shape: f32[8,1], index: 2, kind: input, shape index: {}]
  %s3 = inlined_call_operand.hbm [shape: f32[2,8,16,16], index: 3, kind: output, shape index: {}]
  %s4 = sld [smem:[#allocation0]]
  $region45: #{basic_conv2d.3} parent=0
    _
  %s6 = ssub.s32 1, %s4
  %s7 = scalar_select 0, %s6, %s4
  $region1: #{basic_conv2d.3} parent=0
    #allocation2 [shape = 'u8[131072]{0}', space=vmem, size = 0x20000, scoped, tag = 'output window, operand 0']
    #allocation3 [shape = 's32[2]{0}', space=sflag, size = 0x8, scoped, tag = 'scoped memory for basic_conv2d.3']
    %8 = vsyncpa [#allocation3], 0
    %s9 = scalar_lea.sflag [#allocation3], 1
    %10 = vsyncpa %s9, 0
    loop: start=0, step=1, limit=4
    $region2: #{basic_conv2d.3} parent=1 // loop_pre_header
      _
    $region3: #{basic_conv2d.3} parent=1 // loop_header
      %s12 = sphi 0, %s16
      %p13 = scmp.ge.s32.totalorder %s12, 4
      %s19 = sphi 0, %s31
      %s20 = sphi 0, %s27
      %s21 = sphi 0, %s19
      %s22 = sphi 0, %s20
      %s23 = sphi 0, %s21
      %s24 = sphi 0, %s22
      %s36 = sphi 0, %s38
      %s39 = sphi 0, %s36
      %s40 = sphi 0, %s39
      %s56 = sphi 0, %s40
      %s62 = sphi 0, %s64
      %s65 = sphi 0, %s62
      %s66 = sphi 0, %s65
      %s82 = sphi 0, %s66
      %s88 = sphi 0, %s90
      %s91 = sphi 0, %s88
      %s92 = sphi 0, %s91
      %s108 = sphi 0, %s92
      %s116 = sphi 0, %s118
      %s119 = sphi 0, %s116
      %s120 = sphi 0, %s119
      %s136 = sphi 0, %s120
    $region4: #{basic_conv2d.3} parent=1 // loop_header_branch
      %15 = sbr.rel (%p13) target = $region8
    $region5: #{basic_conv2d.3} parent=1 // loop_body
      %s17 = ssub.s32 %s12, 1
      %s18 = ssub.s32 %s12, 2
      %s25 = sadd.s32 1, %s20
      %p26 = scmp.ge.s32.totalorder %s25, 1
      %s27 = scalar_select %p26, 0, %s25
      %s28 = sadd.s32 1, %s19
      %s29 = scalar_select %p26, %s28, %s19
      %p30 = scmp.ge.s32.totalorder %s29, 2
      %s31 = scalar_select %p30, 0, %s29
      %s32 = ssub.s32 %s19, %s31
      %s33 = ssub.s32 %s20, %s27
      %s34 = sor.u32 %s32, %s33
      %p35 = scmp.eq.s32.totalorder %s34, 0
      %s37 = sadd.s32 %s36, 1
      %s38 = scalar_select %p35, %s36, %s37
      %p41 = pneg %p35
      %p42 = scmp.eq.s32.totalorder %s12, 1
      %p43 = por %p41, %p42
      %p44 = scmp.ne.s32.totalorder %s36, %s39
      %p45 = scmp.eq.s32.totalorder %s12, 0
      %p46 = por %p44, %p45
      %p47 = scmp.ne.s32.totalorder %s36, %s39
      %p48 = scmp.eq.s32.totalorder %s17, 1
      %p49 = por %p47, %p48
      %p50 = scmp.ne.s32.totalorder %s39, %s40
      %p51 = scmp.eq.s32.totalorder %s17, 0
      %p52 = por %p50, %p51
      %p53 = scmp.ne.s32.totalorder %s39, %s40
      %p54 = scmp.eq.s32.totalorder %s18, 1
      %p55 = por %p53, %p54
      %p57 = scmp.ne.s32.totalorder %s40, %s56
      %p58 = scmp.eq.s32.totalorder %s18, 0
      %p59 = por %p57, %p58
      %s60 = ssub.s32 %s20, %s27
      %p61 = scmp.eq.s32.totalorder %s60, 0
      %s63 = sadd.s32 %s62, 1
      %s64 = scalar_select %p61, %s62, %s63
      %p67 = pneg %p61
      %p68 = scmp.eq.s32.totalorder %s12, 1
      %p69 = por %p67, %p68
      %p70 = scmp.ne.s32.totalorder %s62, %s65
      %p71 = scmp.eq.s32.totalorder %s12, 0
      %p72 = por %p70, %p71
      %p73 = scmp.ne.s32.totalorder %s62, %s65
      %p74 = scmp.eq.s32.totalorder %s17, 1
      %p75 = por %p73, %p74
      %p76 = scmp.ne.s32.totalorder %s65, %s66
      %p77 = scmp.eq.s32.totalorder %s17, 0
      %p78 = por %p76, %p77
      %p79 = scmp.ne.s32.totalorder %s65, %s66
      %p80 = scmp.eq.s32.totalorder %s18, 1
      %p81 = por %p79, %p80
      %p83 = scmp.ne.s32.totalorder %s66, %s82
      %p84 = scmp.eq.s32.totalorder %s18, 0
      %p85 = por %p83, %p84
      %s86 = ssub.s32 %s20, %s27
      %p87 = scmp.eq.s32.totalorder %s86, 0
      %s89 = sadd.s32 %s88, 1
      %s90 = scalar_select %p87, %s88, %s89
      %p93 = pneg %p87
      %p94 = scmp.eq.s32.totalorder %s12, 1
      %p95 = por %p93, %p94
      %p96 = scmp.ne.s32.totalorder %s88, %s91
      %p97 = scmp.eq.s32.totalorder %s12, 0
      %p98 = por %p96, %p97
      %p99 = scmp.ne.s32.totalorder %s88, %s91
      %p100 = scmp.eq.s32.totalorder %s17, 1
      %p101 = por %p99, %p100
      %p102 = scmp.ne.s32.totalorder %s91, %s92
      %p103 = scmp.eq.s32.totalorder %s17, 0
      %p104 = por %p102, %p103
      %p105 = scmp.ne.s32.totalorder %s91, %s92
      %p106 = scmp.eq.s32.totalorder %s18, 1
      %p107 = por %p105, %p106
      %p109 = scmp.ne.s32.totalorder %s92, %s108
      %p110 = scmp.eq.s32.totalorder %s18, 0
      %p111 = por %p109, %p110
      %s112 = ssub.s32 %s19, %s31
      %s113 = ssub.s32 %s20, %s27
      %s114 = sor.u32 %s112, %s113
      %p115 = scmp.eq.s32.totalorder %s114, 0
      %s117 = sadd.s32 %s116, 1
      %s118 = scalar_select %p115, %s116, %s117
      %p121 = pneg %p115
      %p122 = scmp.eq.s32.totalorder %s12, 1
      %p123 = por %p121, %p122
      %p124 = scmp.ne.s32.totalorder %s116, %s119
      %p125 = scmp.eq.s32.totalorder %s12, 0
      %p126 = por %p124, %p125
      %p127 = scmp.ne.s32.totalorder %s116, %s119
      %p128 = scmp.eq.s32.totalorder %s17, 1
      %p129 = por %p127, %p128
      %p130 = scmp.ne.s32.totalorder %s119, %s120
      %p131 = scmp.eq.s32.totalorder %s17, 0
      %p132 = por %p130, %p131
      %p133 = scmp.ne.s32.totalorder %s119, %s120
      %p134 = scmp.eq.s32.totalorder %s18, 1
      %p135 = por %p133, %p134
      %p137 = scmp.ne.s32.totalorder %s120, %s136
      %p138 = scmp.eq.s32.totalorder %s18, 0
      %p139 = por %p137, %p138
      %p140 = scmp.le.s32.totalorder 1, %s12
      %p141 = scmp.lt.s32.totalorder %s12, 3
      %p142 = pnand %p140, %p141
      %p143 = pneg %p142
      // Predicated region
      $region9: #{basic_conv2d.3} parent=5 // pred_check
        _
      $region10: #{basic_conv2d.3} parent=5 // pred_check_branch
        %145 = sbr.rel (%p142) target = $region12
      $region11: #{basic_conv2d.3} parent=5 // pred_region
        %s146 = ssub.s32 %s12, 1
        // Predicated region
        $region13: #{basic_conv2d.3} parent=11 // pred_check
          %p147 = pneg %p78
        $region14: #{basic_conv2d.3} parent=11 // pred_check_branch
          %149 = sbr.rel (%p147) target = $region16
        $region15: #{basic_conv2d.3} parent=11 // pred_region
          %p150 = scmp.lt.s32.totalorder %s22, 0
          %s151 = scalar_select %p150, %s22, 0
          %s152 = smul.addr %s151, 8
          %s153 = scalar_lea.vmem %s1, %s152
        $region16: #{basic_conv2d.3} parent=11 // pred_fallthru
          _
        // Predicated region
        $region17: #{basic_conv2d.3} parent=11 // pred_check
          %p154 = pneg %p104
        $region18: #{basic_conv2d.3} parent=11 // pred_check_branch
          %156 = sbr.rel (%p154) target = $region20
        $region19: #{basic_conv2d.3} parent=11 // pred_region
          %p157 = scmp.lt.s32.totalorder %s22, 0
          %s158 = scalar_select %p157, %s22, 0
          %s159 = smul.addr %s158, 8
          %s160 = scalar_lea.vmem %s2, %s159
        $region20: #{basic_conv2d.3} parent=11 // pred_fallthru
          _
      $region12: #{basic_conv2d.3} parent=5 // pred_fallthru
        _
      %p161 = scmp.lt.s32.totalorder %s12, 2
      // Predicated region
      $region21: #{basic_conv2d.3} parent=5 // pred_check
        %p162 = pneg %p161
      $region22: #{basic_conv2d.3} parent=5 // pred_check_branch
        %164 = sbr.rel (%p162) target = $region24
      $region23: #{basic_conv2d.3} parent=5 // pred_region
        // Predicated region
        $region25: #{basic_conv2d.3} parent=23 // pred_check
          %p165 = pneg %p46
        $region26: #{basic_conv2d.3} parent=23 // pred_check_branch
          %167 = sbr.rel (%p165) target = $region28
        $region27: #{basic_conv2d.3} parent=23 // pred_region
          %p168 = scmp.lt.s32.totalorder %s19, 1
          %s169 = scalar_select %p168, %s19, 1
          %p170 = scmp.lt.s32.totalorder %s20, 0
          %s171 = scalar_select %p170, %s20, 0
          %s172 = smul.addr %s171, 3
          %s173 = smul.addr %s169, 3
          %s174 = sadd.s32 %s172, %s173
          %s175 = smul.addr %s174, 8
          %s176 = scalar_lea.vmem %s0, %s175
        $region28: #{basic_conv2d.3} parent=23 // pred_fallthru
          _
      $region24: #{basic_conv2d.3} parent=5 // pred_fallthru
        _
      %p177 = scmp.le.s32.totalorder 1, %s12
      %p178 = scmp.lt.s32.totalorder %s12, 3
      %p179 = pnand %p177, %p178
      %p180 = pneg %p179
      // Predicated region
      $region29: #{basic_conv2d.3} parent=5 // pred_check
        _
      $region30: #{basic_conv2d.3} parent=5 // pred_check_branch
        %182 = sbr.rel (%p179) target = $region32
      $region31: #{basic_conv2d.3} parent=5 // pred_region
        %s183 = ssub.s32 %s12, 1
        %p184 = scmp.lt.s32.totalorder %s21, 1
        %s185 = scalar_select %p184, %s21, 1
        %p186 = scmp.lt.s32.totalorder %s22, 0
        %s187 = scalar_select %p186, %s22, 0
        %s188 = smul.addr %s187, 3
        %s189 = smul.addr %s185, 3
        %s190 = sadd.s32 %s188, %s189
        %s191 = smul.addr %s190, 8
        %s192 = scalar_lea.vmem %s0, %s191
        %p193 = pneg %p52
        %p194 = pneg %p49
        %p195 = scmp.lt.s32.totalorder %s22, 0
        %s196 = scalar_select %p195, %s22, 0
        %s197 = smul.addr %s196, 8
        %s198 = scalar_lea.vmem %s1, %s197
        %p199 = pneg %p78
        %p200 = pneg %p75
        %p201 = scmp.lt.s32.totalorder %s22, 0
        %s202 = scalar_select %p201, %s22, 0
        %s203 = smul.addr %s202, 8
        %s204 = scalar_lea.vmem %s2, %s203
        %p205 = pneg %p104
        %p206 = pneg %p101
        %p207 = pneg %p132
        %p208 = pneg %p129
        %s209 = sand.u32 %s119, 1
        %s210 = scalar_lea.sflag [#allocation3], %s209
        %s211 = sand.u32 %s119, 1
        %s212 = smul.addr %s211, 128
        %s213 = scalar_lea.vmem [#allocation2], %s212
        %p214 = scmp.lt.s32.totalorder %s21, 1
        %s215 = scalar_select %p214, %s21, 1
        %p216 = scmp.lt.s32.totalorder %s22, 0
        %s217 = scalar_select %p216, %s22, 0
        %s218 = smul.addr %s217, 3
        %s219 = smul.addr %s215, 3
        %s220 = sadd.s32 %s218, %s219
        %s221 = smul.addr %s220, 8
        %s222 = scalar_lea.vmem %s0, %s221
        %p223 = scmp.lt.s32.totalorder %s22, 0
        %s224 = scalar_select %p223, %s22, 0
        %s225 = smul.addr %s224, 8
        %s226 = scalar_lea.vmem %s1, %s225
        %p227 = scmp.lt.s32.totalorder %s22, 0
        %s228 = scalar_select %p227, %s22, 0
        %s229 = smul.addr %s228, 8
        %s230 = scalar_lea.vmem %s2, %s229
        %s231 = smul.u32 8, %s22
        %v232 = vld [vmem:[%s222] sm:$0xff]
        %v233 = vld [vmem:[%s222 + $0x8] sm:$0xff]
        %v234 = vld [vmem:[%s222 + $0x10] sm:$0xff]
        %v235 = vld [vmem:[%s226] sm:$0xff]
        %237 = vset.pattern.permute.xlu0 0
        %238 = vperm.xlu0 %237, %v235
        %v239 = vpop.permute.xlu0 %238
        %v241 = vmul.f32 %v232, %v239
        %v242 = vmul.f32 %v233, %v239
        %v243 = vmul.f32 %v234, %v239
        %v244 = vld [vmem:[%s230] sm:$0xff]
        %246 = vset.pattern.permute.xlu0 0
        %247 = vperm.xlu0 %246, %v244
        %v248 = vpop.permute.xlu0 %247
        %v250 = vadd.f32 %v241, %v248
        %v251 = vadd.f32 %v242, %v248
        %v252 = vadd.f32 %v243, %v248
        %v253 = vmax.f32 %v250, 0.0
        %v254 = vmax.f32 %v251, 0.0
        %v255 = vmax.f32 %v252, 0.0
        %v257 = vcombine.high %v253, %v253
        %v259 = vunpack.c.l.s4 1966171168
        %v260 = vunpack.c.0.s8 %v259
        %v261 = vlaneseq
        %v262 = vshrl.u32 %v261, 7
        %v263 = vsub.s32 %v260, %v262
        %v264 = vrot.slane %v253, %v263
        %v266 = vunpack.c.l.s4 1966171168
        %v267 = vunpack.c.0.s8 %v266
        %v268 = vlaneseq
        %v269 = vshrl.u32 %v268, 7
        %v270 = vsub.s32 %v267, %v269
        %v271 = vrot.slane %v257, %v270
        %v272 = vcombine.high %v264, %v264
        %v273 = vcombine.high %v271, %v271
        %v275 = vunpack.c.l.s4 1966171168
        %v276 = vunpack.c.0.s8 %v275
        %v277 = vlaneseq
        %v278 = vshrl.u32 %v277, 7
        %v279 = vsub.s32 %v276, %v278
        %v280 = vrot.slane %v264, %v279
        %v282 = vunpack.c.l.s4 1966171168
        %v283 = vunpack.c.0.s8 %v282
        %v284 = vlaneseq
        %v285 = vshrl.u32 %v284, 7
        %v286 = vsub.s32 %v283, %v285
        %v287 = vrot.slane %v271, %v286
        %v289 = vunpack.c.l.s4 1966171168
        %v290 = vunpack.c.0.s8 %v289
        %v291 = vlaneseq
        %v292 = vshrl.u32 %v291, 7
        %v293 = vsub.s32 %v290, %v292
        %v294 = vrot.slane %v272, %v293
        %v296 = vunpack.c.l.s4 1966171168
        %v297 = vunpack.c.0.s8 %v296
        %v298 = vlaneseq
        %v299 = vshrl.u32 %v298, 7
        %v300 = vsub.s32 %v297, %v299
        %v301 = vrot.slane %v273, %v300
        %v302 = vcombine.high %v280, %v280
        %v303 = vcombine.high %v287, %v287
        %v304 = vcombine.high %v294, %v294
        %v305 = vcombine.high %v301, %v301
        %vm314 = vcmask 122880
        %315 = vst.msk [vmem:[%s213] sm:$0x1] %vm314, %v280
        %316 = vst.msk [vmem:[%s213 + $0x10] sm:$0x1] %vm314, %v294
        %317 = vst.msk [vmem:[%s213 + $0x20] sm:$0x1] %vm314, %v302
        %318 = vst.msk [vmem:[%s213 + $0x30] sm:$0x1] %vm314, %v304
        %319 = vst.msk [vmem:[%s213 + $0x40] sm:$0x1] %vm314, %v287
        %320 = vst.msk [vmem:[%s213 + $0x50] sm:$0x1] %vm314, %v301
        %321 = vst.msk [vmem:[%s213 + $0x60] sm:$0x1] %vm314, %v303
        %322 = vst.msk [vmem:[%s213 + $0x70] sm:$0x1] %vm314, %v305
        %v323 = vlaneseq
        %v324 = vshrl.u32 %v323, 7
        %v325 = vsub.s32 0, %v324
        %v326 = vrot.slane %v280, %v325
        %v327 = vlaneseq
        %v328 = vshrl.u32 %v327, 7
        %v329 = vsub.s32 0, %v328
        %v330 = vrot.slane %v294, %v329
        %v331 = vlaneseq
        %v332 = vshrl.u32 %v331, 7
        %v333 = vsub.s32 0, %v332
        %v334 = vrot.slane %v302, %v333
        %v335 = vlaneseq
        %v336 = vshrl.u32 %v335, 7
        %v337 = vsub.s32 0, %v336
        %v338 = vrot.slane %v304, %v337
        %v339 = vlaneseq
        %v340 = vshrl.u32 %v339, 7
        %v341 = vsub.s32 0, %v340
        %v342 = vrot.slane %v287, %v341
        %v343 = vlaneseq
        %v344 = vshrl.u32 %v343, 7
        %v345 = vsub.s32 0, %v344
        %v346 = vrot.slane %v301, %v345
        %v347 = vlaneseq
        %v348 = vshrl.u32 %v347, 7
        %v349 = vsub.s32 0, %v348
        %v350 = vrot.slane %v303, %v349
        %v351 = vlaneseq
        %v352 = vshrl.u32 %v351, 7
        %v353 = vsub.s32 0, %v352
        %v354 = vrot.slane %v305, %v353
        %355 = vrot.lane.b32.xlu0 %v326, 110
        %v356 = vpop.permute.xlu0 %355
        %357 = vrot.lane.b32.xlu0 %v330, 110
        %v358 = vpop.permute.xlu0 %357
        %359 = vrot.lane.b32.xlu0 %v334, 110
        %v360 = vpop.permute.xlu0 %359
        %361 = vrot.lane.b32.xlu0 %v338, 110
        %v362 = vpop.permute.xlu0 %361
        %363 = vrot.lane.b32.xlu0 %v342, 110
        %v364 = vpop.permute.xlu0 %363
        %365 = vrot.lane.b32.xlu0 %v346, 110
        %v366 = vpop.permute.xlu0 %365
        %367 = vrot.lane.b32.xlu0 %v350, 110
        %v368 = vpop.permute.xlu0 %367
        %369 = vrot.lane.b32.xlu0 %v354, 110
        %v370 = vpop.permute.xlu0 %369
        %379 = vst.msk [vmem:[%s213 + $0x1] sm:$0x1] %vm314, %v356
        %380 = vst.msk [vmem:[%s213 + $0x11] sm:$0x1] %vm314, %v358
        %381 = vst.msk [vmem:[%s213 + $0x21] sm:$0x1] %vm314, %v360
        %382 = vst.msk [vmem:[%s213 + $0x31] sm:$0x1] %vm314, %v362
        %383 = vst.msk [vmem:[%s213 + $0x41] sm:$0x1] %vm314, %v364
        %384 = vst.msk [vmem:[%s213 + $0x51] sm:$0x1] %vm314, %v366
        %385 = vst.msk [vmem:[%s213 + $0x61] sm:$0x1] %vm314, %v368
        %386 = vst.msk [vmem:[%s213 + $0x71] sm:$0x1] %vm314, %v370
        %387 = vrot.lane.b32.xlu0 %v326, 92
        %v388 = vpop.permute.xlu0 %387
        %389 = vrot.lane.b32.xlu0 %v330, 92
        %v390 = vpop.permute.xlu0 %389
        %391 = vrot.lane.b32.xlu0 %v334, 92
        %v392 = vpop.permute.xlu0 %391
        %393 = vrot.lane.b32.xlu0 %v338, 92
        %v394 = vpop.permute.xlu0 %393
        %395 = vrot.lane.b32.xlu0 %v342, 92
        %v396 = vpop.permute.xlu0 %395
        %397 = vrot.lane.b32.xlu0 %v346, 92
        %v398 = vpop.permute.xlu0 %397
        %399 = vrot.lane.b32.xlu0 %v350, 92
        %v400 = vpop.permute.xlu0 %399
        %401 = vrot.lane.b32.xlu0 %v354, 92
        %v402 = vpop.permute.xlu0 %401
        %411 = vst.msk [vmem:[%s213 + $0x2] sm:$0x1] %vm314, %v388
        %412 = vst.msk [vmem:[%s213 + $0x12] sm:$0x1] %vm314, %v390
        %413 = vst.msk [vmem:[%s213 + $0x22] sm:$0x1] %vm314, %v392
        %414 = vst.msk [vmem:[%s213 + $0x32] sm:$0x1] %vm314, %v394
        %415 = vst.msk [vmem:[%s213 + $0x42] sm:$0x1] %vm314, %v396
        %416 = vst.msk [vmem:[%s213 + $0x52] sm:$0x1] %vm314, %v398
        %417 = vst.msk [vmem:[%s213 + $0x62] sm:$0x1] %vm314, %v400
        %418 = vst.msk [vmem:[%s213 + $0x72] sm:$0x1] %vm314, %v402
        %419 = vrot.lane.b32.xlu0 %v326, 74
        %v420 = vpop.permute.xlu0 %419
        %421 = vrot.lane.b32.xlu0 %v330, 74
        %v422 = vpop.permute.xlu0 %421
        %423 = vrot.lane.b32.xlu0 %v334, 74
        %v424 = vpop.permute.xlu0 %423
        %425 = vrot.lane.b32.xlu0 %v338, 74
        %v426 = vpop.permute.xlu0 %425
        %427 = vrot.lane.b32.xlu0 %v342, 74
        %v428 = vpop.permute.xlu0 %427
        %429 = vrot.lane.b32.xlu0 %v346, 74
        %v430 = vpop.permute.xlu0 %429
        %431 = vrot.lane.b32.xlu0 %v350, 74
        %v432 = vpop.permute.xlu0 %431
        %433 = vrot.lane.b32.xlu0 %v354, 74
        %v434 = vpop.permute.xlu0 %433
        %443 = vst.msk [vmem:[%s213 + $0x3] sm:$0x1] %vm314, %v420
        %444 = vst.msk [vmem:[%s213 + $0x13] sm:$0x1] %vm314, %v422
        %445 = vst.msk [vmem:[%s213 + $0x23] sm:$0x1] %vm314, %v424
        %446 = vst.msk [vmem:[%s213 + $0x33] sm:$0x1] %vm314, %v426
        %447 = vst.msk [vmem:[%s213 + $0x43] sm:$0x1] %vm314, %v428
        %448 = vst.msk [vmem:[%s213 + $0x53] sm:$0x1] %vm314, %v430
        %449 = vst.msk [vmem:[%s213 + $0x63] sm:$0x1] %vm314, %v432
        %450 = vst.msk [vmem:[%s213 + $0x73] sm:$0x1] %vm314, %v434
        %451 = vrot.lane.b32.xlu0 %v326, 56
        %v452 = vpop.permute.xlu0 %451
        %453 = vrot.lane.b32.xlu0 %v330, 56
        %v454 = vpop.permute.xlu0 %453
        %455 = vrot.lane.b32.xlu0 %v334, 56
        %v456 = vpop.permute.xlu0 %455
        %457 = vrot.lane.b32.xlu0 %v338, 56
        %v458 = vpop.permute.xlu0 %457
        %459 = vrot.lane.b32.xlu0 %v342, 56
        %v460 = vpop.permute.xlu0 %459
        %461 = vrot.lane.b32.xlu0 %v346, 56
        %v462 = vpop.permute.xlu0 %461
        %463 = vrot.lane.b32.xlu0 %v350, 56
        %v464 = vpop.permute.xlu0 %463
        %465 = vrot.lane.b32.xlu0 %v354, 56
        %v466 = vpop.permute.xlu0 %465
        %475 = vst.msk [vmem:[%s213 + $0x4] sm:$0x1] %vm314, %v452
        %476 = vst.msk [vmem:[%s213 + $0x14] sm:$0x1] %vm314, %v454
        %477 = vst.msk [vmem:[%s213 + $0x24] sm:$0x1] %vm314, %v456
        %478 = vst.msk [vmem:[%s213 + $0x34] sm:$0x1] %vm314, %v458
        %479 = vst.msk [vmem:[%s213 + $0x44] sm:$0x1] %vm314, %v460
        %480 = vst.msk [vmem:[%s213 + $0x54] sm:$0x1] %vm314, %v462
        %481 = vst.msk [vmem:[%s213 + $0x64] sm:$0x1] %vm314, %v464
        %482 = vst.msk [vmem:[%s213 + $0x74] sm:$0x1] %vm314, %v466
        %483 = vrot.lane.b32.xlu0 %v326, 38
        %v484 = vpop.permute.xlu0 %483
        %485 = vrot.lane.b32.xlu0 %v330, 38
        %v486 = vpop.permute.xlu0 %485
        %487 = vrot.lane.b32.xlu0 %v334, 38
        %v488 = vpop.permute.xlu0 %487
        %489 = vrot.lane.b32.xlu0 %v338, 38
        %v490 = vpop.permute.xlu0 %489
        %491 = vrot.lane.b32.xlu0 %v342, 38
        %v492 = vpop.permute.xlu0 %491
        %493 = vrot.lane.b32.xlu0 %v346, 38
        %v494 = vpop.permute.xlu0 %493
        %495 = vrot.lane.b32.xlu0 %v350, 38
        %v496 = vpop.permute.xlu0 %495
        %497 = vrot.lane.b32.xlu0 %v354, 38
        %v498 = vpop.permute.xlu0 %497
        %507 = vst.msk [vmem:[%s213 + $0x5] sm:$0x1] %vm314, %v484
        %508 = vst.msk [vmem:[%s213 + $0x15] sm:$0x1] %vm314, %v486
        %509 = vst.msk [vmem:[%s213 + $0x25] sm:$0x1] %vm314, %v488
        %510 = vst.msk [vmem:[%s213 + $0x35] sm:$0x1] %vm314, %v490
        %511 = vst.msk [vmem:[%s213 + $0x45] sm:$0x1] %vm314, %v492
        %512 = vst.msk [vmem:[%s213 + $0x55] sm:$0x1] %vm314, %v494
        %513 = vst.msk [vmem:[%s213 + $0x65] sm:$0x1] %vm314, %v496
        %514 = vst.msk [vmem:[%s213 + $0x75] sm:$0x1] %vm314, %v498
        %515 = vrot.lane.b32.xlu0 %v326, 20
        %v516 = vpop.permute.xlu0 %515
        %517 = vrot.lane.b32.xlu0 %v330, 20
        %v518 = vpop.permute.xlu0 %517
        %519 = vrot.lane.b32.xlu0 %v334, 20
        %v520 = vpop.permute.xlu0 %519
        %521 = vrot.lane.b32.xlu0 %v338, 20
        %v522 = vpop.permute.xlu0 %521
        %523 = vrot.lane.b32.xlu0 %v342, 20
        %v524 = vpop.permute.xlu0 %523
        %525 = vrot.lane.b32.xlu0 %v346, 20
        %v526 = vpop.permute.xlu0 %525
        %527 = vrot.lane.b32.xlu0 %v350, 20
        %v528 = vpop.permute.xlu0 %527
        %529 = vrot.lane.b32.xlu0 %v354, 20
        %v530 = vpop.permute.xlu0 %529
        %539 = vst.msk [vmem:[%s213 + $0x6] sm:$0x1] %vm314, %v516
        %540 = vst.msk [vmem:[%s213 + $0x16] sm:$0x1] %vm314, %v518
        %541 = vst.msk [vmem:[%s213 + $0x26] sm:$0x1] %vm314, %v520
        %542 = vst.msk [vmem:[%s213 + $0x36] sm:$0x1] %vm314, %v522
        %543 = vst.msk [vmem:[%s213 + $0x46] sm:$0x1] %vm314, %v524
        %544 = vst.msk [vmem:[%s213 + $0x56] sm:$0x1] %vm314, %v526
        %545 = vst.msk [vmem:[%s213 + $0x66] sm:$0x1] %vm314, %v528
        %546 = vst.msk [vmem:[%s213 + $0x76] sm:$0x1] %vm314, %v530
        %v548 = vcombine.low %v253, %v254
        %v549 = vcombine.high %v253, %v254
        %v551 = vunpack.c.l.s4 1966171168
        %v552 = vunpack.c.0.s8 %v551
        %v553 = vlaneseq
        %v554 = vshrl.u32 %v553, 7
        %v555 = vsub.s32 %v552, %v554
        %v556 = vrot.slane %v548, %v555
        %v558 = vunpack.c.l.s4 1966171168
        %v559 = vunpack.c.0.s8 %v558
        %v560 = vlaneseq
        %v561 = vshrl.u32 %v560, 7
        %v562 = vsub.s32 %v559, %v561
        %v563 = vrot.slane %v549, %v562
        %v564 = vcombine.high %v556, %v556
        %v565 = vcombine.high %v563, %v563
        %v567 = vunpack.c.l.s4 1966171168
        %v568 = vunpack.c.0.s8 %v567
        %v569 = vlaneseq
        %v570 = vshrl.u32 %v569, 7
        %v571 = vsub.s32 %v568, %v570
        %v572 = vrot.slane %v556, %v571
        %v574 = vunpack.c.l.s4 1966171168
        %v575 = vunpack.c.0.s8 %v574
        %v576 = vlaneseq
        %v577 = vshrl.u32 %v576, 7
        %v578 = vsub.s32 %v575, %v577
        %v579 = vrot.slane %v563, %v578
        %v581 = vunpack.c.l.s4 1966171168
        %v582 = vunpack.c.0.s8 %v581
        %v583 = vlaneseq
        %v584 = vshrl.u32 %v583, 7
        %v585 = vsub.s32 %v582, %v584
        %v586 = vrot.slane %v564, %v585
        %v588 = vunpack.c.l.s4 1966171168
        %v589 = vunpack.c.0.s8 %v588
        %v590 = vlaneseq
        %v591 = vshrl.u32 %v590, 7
        %v592 = vsub.s32 %v589, %v591
        %v593 = vrot.slane %v565, %v592
        %v594 = vcombine.high %v572, %v572
        %v595 = vcombine.high %v579, %v579
        %v596 = vcombine.high %v586, %v586
        %v597 = vcombine.high %v593, %v593
        %v598 = vlaneseq
        %v599 = vshrl.u32 %v598, 7
        %v600 = vsub.s32 0, %v599
        %v601 = vrot.slane %v572, %v600
        %v602 = vlaneseq
        %v603 = vshrl.u32 %v602, 7
        %v604 = vsub.s32 1, %v603
        %v605 = vrot.slane %v572, %v604
        %v606 = vlaneseq
        %v607 = vshrl.u32 %v606, 7
        %v608 = vsub.s32 0, %v607
        %v609 = vrot.slane %v586, %v608
        %v610 = vlaneseq
        %v611 = vshrl.u32 %v610, 7
        %v612 = vsub.s32 1, %v611
        %v613 = vrot.slane %v586, %v612
        %v614 = vlaneseq
        %v615 = vshrl.u32 %v614, 7
        %v616 = vsub.s32 0, %v615
        %v617 = vrot.slane %v594, %v616
        %v618 = vlaneseq
        %v619 = vshrl.u32 %v618, 7
        %v620 = vsub.s32 1, %v619
        %v621 = vrot.slane %v594, %v620
        %v622 = vlaneseq
        %v623 = vshrl.u32 %v622, 7
        %v624 = vsub.s32 0, %v623
        %v625 = vrot.slane %v596, %v624
        %v626 = vlaneseq
        %v627 = vshrl.u32 %v626, 7
        %v628 = vsub.s32 1, %v627
        %v629 = vrot.slane %v596, %v628
        %v630 = vlaneseq
        %v631 = vshrl.u32 %v630, 7
        %v632 = vsub.s32 0, %v631
        %v633 = vrot.slane %v579, %v632
        %v634 = vlaneseq
        %v635 = vshrl.u32 %v634, 7
        %v636 = vsub.s32 1, %v635
        %v637 = vrot.slane %v579, %v636
        %v638 = vlaneseq
        %v639 = vshrl.u32 %v638, 7
        %v640 = vsub.s32 0, %v639
        %v641 = vrot.slane %v593, %v640
        %v642 = vlaneseq
        %v643 = vshrl.u32 %v642, 7
        %v644 = vsub.s32 1, %v643
        %v645 = vrot.slane %v593, %v644
        %v646 = vlaneseq
        %v647 = vshrl.u32 %v646, 7
        %v648 = vsub.s32 0, %v647
        %v649 = vrot.slane %v595, %v648
        %v650 = vlaneseq
        %v651 = vshrl.u32 %v650, 7
        %v652 = vsub.s32 1, %v651
        %v653 = vrot.slane %v595, %v652
        %v654 = vlaneseq
        %v655 = vshrl.u32 %v654, 7
        %v656 = vsub.s32 0, %v655
        %v657 = vrot.slane %v597, %v656
        %v658 = vlaneseq
        %v659 = vshrl.u32 %v658, 7
        %v660 = vsub.s32 1, %v659
        %v661 = vrot.slane %v597, %v660
        %662 = vrot.lane.b32.xlu0 %v601, 2
        %v663 = vpop.permute.xlu0 %662
        %664 = vrot.lane.b32.xlu0 %v605, 2
        %v665 = vpop.permute.xlu0 %664
        %666 = vrot.lane.b32.xlu0 %v609, 2
        %v667 = vpop.permute.xlu0 %666
        %668 = vrot.lane.b32.xlu0 %v613, 2
        %v669 = vpop.permute.xlu0 %668
        %670 = vrot.lane.b32.xlu0 %v617, 2
        %v671 = vpop.permute.xlu0 %670
        %672 = vrot.lane.b32.xlu0 %v621, 2
        %v673 = vpop.permute.xlu0 %672
        %674 = vrot.lane.b32.xlu0 %v625, 2
        %v675 = vpop.permute.xlu0 %674
        %676 = vrot.lane.b32.xlu0 %v629, 2
        %v677 = vpop.permute.xlu0 %676
        %678 = vrot.lane.b32.xlu0 %v633, 2
        %v679 = vpop.permute.xlu0 %678
        %680 = vrot.lane.b32.xlu0 %v637, 2
        %v681 = vpop.permute.xlu0 %680
        %682 = vrot.lane.b32.xlu0 %v641, 2
        %v683 = vpop.permute.xlu0 %682
        %684 = vrot.lane.b32.xlu0 %v645, 2
        %v685 = vpop.permute.xlu0 %684
        %686 = vrot.lane.b32.xlu0 %v649, 2
        %v687 = vpop.permute.xlu0 %686
        %688 = vrot.lane.b32.xlu0 %v653, 2
        %v689 = vpop.permute.xlu0 %688
        %690 = vrot.lane.b32.xlu0 %v657, 2
        %v691 = vpop.permute.xlu0 %690
        %692 = vrot.lane.b32.xlu0 %v661, 2
        %v693 = vpop.permute.xlu0 %692
        %vm694 = vcmask 15360
        %v695 = vsel %vm694, %v663, %v665
        %v696 = vsel %vm694, %v667, %v669
        %v697 = vsel %vm694, %v671, %v673
        %v698 = vsel %vm694, %v675, %v677
        %v699 = vsel %vm694, %v679, %v681
        %v700 = vsel %vm694, %v683, %v685
        %v701 = vsel %vm694, %v687, %v689
        %v702 = vsel %vm694, %v691, %v693
        %711 = vst.msk [vmem:[%s213 + $0x7] sm:$0x1] %vm314, %v695
        %712 = vst.msk [vmem:[%s213 + $0x17] sm:$0x1] %vm314, %v696
        %713 = vst.msk [vmem:[%s213 + $0x27] sm:$0x1] %vm314, %v697
        %714 = vst.msk [vmem:[%s213 + $0x37] sm:$0x1] %vm314, %v698
        %715 = vst.msk [vmem:[%s213 + $0x47] sm:$0x1] %vm314, %v699
        %716 = vst.msk [vmem:[%s213 + $0x57] sm:$0x1] %vm314, %v700
        %717 = vst.msk [vmem:[%s213 + $0x67] sm:$0x1] %vm314, %v701
        %718 = vst.msk [vmem:[%s213 + $0x77] sm:$0x1] %vm314, %v702
        %v719 = vcombine.high %v254, %v254
        %v721 = vunpack.c.l.s4 1966171168
        %v722 = vunpack.c.0.s8 %v721
        %v723 = vlaneseq
        %v724 = vshrl.u32 %v723, 7
        %v725 = vsub.s32 %v722, %v724
        %v726 = vrot.slane %v254, %v725
        %v728 = vunpack.c.l.s4 1966171168
        %v729 = vunpack.c.0.s8 %v728
        %v730 = vlaneseq
        %v731 = vshrl.u32 %v730, 7
        %v732 = vsub.s32 %v729, %v731
        %v733 = vrot.slane %v719, %v732
        %v734 = vcombine.high %v726, %v726
        %v735 = vcombine.high %v733, %v733
        %v737 = vunpack.c.l.s4 1966171168
        %v738 = vunpack.c.0.s8 %v737
        %v739 = vlaneseq
        %v740 = vshrl.u32 %v739, 7
        %v741 = vsub.s32 %v738, %v740
        %v742 = vrot.slane %v726, %v741
        %v744 = vunpack.c.l.s4 1966171168
        %v745 = vunpack.c.0.s8 %v744
        %v746 = vlaneseq
        %v747 = vshrl.u32 %v746, 7
        %v748 = vsub.s32 %v745, %v747
        %v749 = vrot.slane %v733, %v748
        %v751 = vunpack.c.l.s4 1966171168
        %v752 = vunpack.c.0.s8 %v751
        %v753 = vlaneseq
        %v754 = vshrl.u32 %v753, 7
        %v755 = vsub.s32 %v752, %v754
        %v756 = vrot.slane %v734, %v755
        %v758 = vunpack.c.l.s4 1966171168
        %v759 = vunpack.c.0.s8 %v758
        %v760 = vlaneseq
        %v761 = vshrl.u32 %v760, 7
        %v762 = vsub.s32 %v759, %v761
        %v763 = vrot.slane %v735, %v762
        %v764 = vcombine.high %v742, %v742
        %v765 = vcombine.high %v749, %v749
        %v766 = vcombine.high %v756, %v756
        %v767 = vcombine.high %v763, %v763
        %v768 = vlaneseq
        %v769 = vshrl.u32 %v768, 7
        %v770 = vsub.s32 0, %v769
        %v771 = vrot.slane %v742, %v770
        %v772 = vlaneseq
        %v773 = vshrl.u32 %v772, 7
        %v774 = vsub.s32 0, %v773
        %v775 = vrot.slane %v756, %v774
        %v776 = vlaneseq
        %v777 = vshrl.u32 %v776, 7
        %v778 = vsub.s32 0, %v777
        %v779 = vrot.slane %v764, %v778
        %v780 = vlaneseq
        %v781 = vshrl.u32 %v780, 7
        %v782 = vsub.s32 0, %v781
        %v783 = vrot.slane %v766, %v782
        %v784 = vlaneseq
        %v785 = vshrl.u32 %v784, 7
        %v786 = vsub.s32 0, %v785
        %v787 = vrot.slane %v749, %v786
        %v788 = vlaneseq
        %v789 = vshrl.u32 %v788, 7
        %v790 = vsub.s32 0, %v789
        %v791 = vrot.slane %v763, %v790
        %v792 = vlaneseq
        %v793 = vshrl.u32 %v792, 7
        %v794 = vsub.s32 0, %v793
        %v795 = vrot.slane %v765, %v794
        %v796 = vlaneseq
        %v797 = vshrl.u32 %v796, 7
        %v798 = vsub.s32 0, %v797
        %v799 = vrot.slane %v767, %v798
        %800 = vrot.lane.b32.xlu0 %v771, 112
        %v801 = vpop.permute.xlu0 %800
        %802 = vrot.lane.b32.xlu0 %v775, 112
        %v803 = vpop.permute.xlu0 %802
        %804 = vrot.lane.b32.xlu0 %v779, 112
        %v805 = vpop.permute.xlu0 %804
        %806 = vrot.lane.b32.xlu0 %v783, 112
        %v807 = vpop.permute.xlu0 %806
        %808 = vrot.lane.b32.xlu0 %v787, 112
        %v809 = vpop.permute.xlu0 %808
        %810 = vrot.lane.b32.xlu0 %v791, 112
        %v811 = vpop.permute.xlu0 %810
        %812 = vrot.lane.b32.xlu0 %v795, 112
        %v813 = vpop.permute.xlu0 %812
        %814 = vrot.lane.b32.xlu0 %v799, 112
        %v815 = vpop.permute.xlu0 %814
        %824 = vst.msk [vmem:[%s213 + $0x8] sm:$0x1] %vm314, %v801
        %825 = vst.msk [vmem:[%s213 + $0x18] sm:$0x1] %vm314, %v803
        %826 = vst.msk [vmem:[%s213 + $0x28] sm:$0x1] %vm314, %v805
        %827 = vst.msk [vmem:[%s213 + $0x38] sm:$0x1] %vm314, %v807
        %828 = vst.msk [vmem:[%s213 + $0x48] sm:$0x1] %vm314, %v809
        %829 = vst.msk [vmem:[%s213 + $0x58] sm:$0x1] %vm314, %v811
        %830 = vst.msk [vmem:[%s213 + $0x68] sm:$0x1] %vm314, %v813
        %831 = vst.msk [vmem:[%s213 + $0x78] sm:$0x1] %vm314, %v815
        %832 = vrot.lane.b32.xlu0 %v771, 94
        %v833 = vpop.permute.xlu0 %832
        %834 = vrot.lane.b32.xlu0 %v775, 94
        %v835 = vpop.permute.xlu0 %834
        %836 = vrot.lane.b32.xlu0 %v779, 94
        %v837 = vpop.permute.xlu0 %836
        %838 = vrot.lane.b32.xlu0 %v783, 94
        %v839 = vpop.permute.xlu0 %838
        %840 = vrot.lane.b32.xlu0 %v787, 94
        %v841 = vpop.permute.xlu0 %840
        %842 = vrot.lane.b32.xlu0 %v791, 94
        %v843 = vpop.permute.xlu0 %842
        %844 = vrot.lane.b32.xlu0 %v795, 94
        %v845 = vpop.permute.xlu0 %844
        %846 = vrot.lane.b32.xlu0 %v799, 94
        %v847 = vpop.permute.xlu0 %846
        %856 = vst.msk [vmem:[%s213 + $0x9] sm:$0x1] %vm314, %v833
        %857 = vst.msk [vmem:[%s213 + $0x19] sm:$0x1] %vm314, %v835
        %858 = vst.msk [vmem:[%s213 + $0x29] sm:$0x1] %vm314, %v837
        %859 = vst.msk [vmem:[%s213 + $0x39] sm:$0x1] %vm314, %v839
        %860 = vst.msk [vmem:[%s213 + $0x49] sm:$0x1] %vm314, %v841
        %861 = vst.msk [vmem:[%s213 + $0x59] sm:$0x1] %vm314, %v843
        %862 = vst.msk [vmem:[%s213 + $0x69] sm:$0x1] %vm314, %v845
        %863 = vst.msk [vmem:[%s213 + $0x79] sm:$0x1] %vm314, %v847
        %864 = vrot.lane.b32.xlu0 %v771, 76
        %v865 = vpop.permute.xlu0 %864
        %866 = vrot.lane.b32.xlu0 %v775, 76
        %v867 = vpop.permute.xlu0 %866
        %868 = vrot.lane.b32.xlu0 %v779, 76
        %v869 = vpop.permute.xlu0 %868
        %870 = vrot.lane.b32.xlu0 %v783, 76
        %v871 = vpop.permute.xlu0 %870
        %872 = vrot.lane.b32.xlu0 %v787, 76
        %v873 = vpop.permute.xlu0 %872
        %874 = vrot.lane.b32.xlu0 %v791, 76
        %v875 = vpop.permute.xlu0 %874
        %876 = vrot.lane.b32.xlu0 %v795, 76
        %v877 = vpop.permute.xlu0 %876
        %878 = vrot.lane.b32.xlu0 %v799, 76
        %v879 = vpop.permute.xlu0 %878
        %888 = vst.msk [vmem:[%s213 + $0xa] sm:$0x1] %vm314, %v865
        %889 = vst.msk [vmem:[%s213 + $0x1a] sm:$0x1] %vm314, %v867
        %890 = vst.msk [vmem:[%s213 + $0x2a] sm:$0x1] %vm314, %v869
        %891 = vst.msk [vmem:[%s213 + $0x3a] sm:$0x1] %vm314, %v871
        %892 = vst.msk [vmem:[%s213 + $0x4a] sm:$0x1] %vm314, %v873
        %893 = vst.msk [vmem:[%s213 + $0x5a] sm:$0x1] %vm314, %v875
        %894 = vst.msk [vmem:[%s213 + $0x6a] sm:$0x1] %vm314, %v877
        %895 = vst.msk [vmem:[%s213 + $0x7a] sm:$0x1] %vm314, %v879
        %896 = vrot.lane.b32.xlu0 %v771, 58
        %v897 = vpop.permute.xlu0 %896
        %898 = vrot.lane.b32.xlu0 %v775, 58
        %v899 = vpop.permute.xlu0 %898
        %900 = vrot.lane.b32.xlu0 %v779, 58
        %v901 = vpop.permute.xlu0 %900
        %902 = vrot.lane.b32.xlu0 %v783, 58
        %v903 = vpop.permute.xlu0 %902
        %904 = vrot.lane.b32.xlu0 %v787, 58
        %v905 = vpop.permute.xlu0 %904
        %906 = vrot.lane.b32.xlu0 %v791, 58
        %v907 = vpop.permute.xlu0 %906
        %908 = vrot.lane.b32.xlu0 %v795, 58
        %v909 = vpop.permute.xlu0 %908
        %910 = vrot.lane.b32.xlu0 %v799, 58
        %v911 = vpop.permute.xlu0 %910
        %920 = vst.msk [vmem:[%s213 + $0xb] sm:$0x1] %vm314, %v897
        %921 = vst.msk [vmem:[%s213 + $0x1b] sm:$0x1] %vm314, %v899
        %922 = vst.msk [vmem:[%s213 + $0x2b] sm:$0x1] %vm314, %v901
        %923 = vst.msk [vmem:[%s213 + $0x3b] sm:$0x1] %vm314, %v903
        %924 = vst.msk [vmem:[%s213 + $0x4b] sm:$0x1] %vm314, %v905
        %925 = vst.msk [vmem:[%s213 + $0x5b] sm:$0x1] %vm314, %v907
        %926 = vst.msk [vmem:[%s213 + $0x6b] sm:$0x1] %vm314, %v909
        %927 = vst.msk [vmem:[%s213 + $0x7b] sm:$0x1] %vm314, %v911
        %928 = vrot.lane.b32.xlu0 %v771, 40
        %v929 = vpop.permute.xlu0 %928
        %930 = vrot.lane.b32.xlu0 %v775, 40
        %v931 = vpop.permute.xlu0 %930
        %932 = vrot.lane.b32.xlu0 %v779, 40
        %v933 = vpop.permute.xlu0 %932
        %934 = vrot.lane.b32.xlu0 %v783, 40
        %v935 = vpop.permute.xlu0 %934
        %936 = vrot.lane.b32.xlu0 %v787, 40
        %v937 = vpop.permute.xlu0 %936
        %938 = vrot.lane.b32.xlu0 %v791, 40
        %v939 = vpop.permute.xlu0 %938
        %940 = vrot.lane.b32.xlu0 %v795, 40
        %v941 = vpop.permute.xlu0 %940
        %942 = vrot.lane.b32.xlu0 %v799, 40
        %v943 = vpop.permute.xlu0 %942
        %952 = vst.msk [vmem:[%s213 + $0xc] sm:$0x1] %vm314, %v929
        %953 = vst.msk [vmem:[%s213 + $0x1c] sm:$0x1] %vm314, %v931
        %954 = vst.msk [vmem:[%s213 + $0x2c] sm:$0x1] %vm314, %v933
        %955 = vst.msk [vmem:[%s213 + $0x3c] sm:$0x1] %vm314, %v935
        %956 = vst.msk [vmem:[%s213 + $0x4c] sm:$0x1] %vm314, %v937
        %957 = vst.msk [vmem:[%s213 + $0x5c] sm:$0x1] %vm314, %v939
        %958 = vst.msk [vmem:[%s213 + $0x6c] sm:$0x1] %vm314, %v941
        %959 = vst.msk [vmem:[%s213 + $0x7c] sm:$0x1] %vm314, %v943
        %960 = vrot.lane.b32.xlu0 %v771, 22
        %v961 = vpop.permute.xlu0 %960
        %962 = vrot.lane.b32.xlu0 %v775, 22
        %v963 = vpop.permute.xlu0 %962
        %964 = vrot.lane.b32.xlu0 %v779, 22
        %v965 = vpop.permute.xlu0 %964
        %966 = vrot.lane.b32.xlu0 %v783, 22
        %v967 = vpop.permute.xlu0 %966
        %968 = vrot.lane.b32.xlu0 %v787, 22
        %v969 = vpop.permute.xlu0 %968
        %970 = vrot.lane.b32.xlu0 %v791, 22
        %v971 = vpop.permute.xlu0 %970
        %972 = vrot.lane.b32.xlu0 %v795, 22
        %v973 = vpop.permute.xlu0 %972
        %974 = vrot.lane.b32.xlu0 %v799, 22
        %v975 = vpop.permute.xlu0 %974
        %984 = vst.msk [vmem:[%s213 + $0xd] sm:$0x1] %vm314, %v961
        %985 = vst.msk [vmem:[%s213 + $0x1d] sm:$0x1] %vm314, %v963
        %986 = vst.msk [vmem:[%s213 + $0x2d] sm:$0x1] %vm314, %v965
        %987 = vst.msk [vmem:[%s213 + $0x3d] sm:$0x1] %vm314, %v967
        %988 = vst.msk [vmem:[%s213 + $0x4d] sm:$0x1] %vm314, %v969
        %989 = vst.msk [vmem:[%s213 + $0x5d] sm:$0x1] %vm314, %v971
        %990 = vst.msk [vmem:[%s213 + $0x6d] sm:$0x1] %vm314, %v973
        %991 = vst.msk [vmem:[%s213 + $0x7d] sm:$0x1] %vm314, %v975
        %v993 = vcombine.low %v254, %v255
        %v994 = vcombine.high %v254, %v255
        %v996 = vunpack.c.l.s4 1966171168
        %v997 = vunpack.c.0.s8 %v996
        %v998 = vlaneseq
        %v999 = vshrl.u32 %v998, 7
        %v1000 = vsub.s32 %v997, %v999
        %v1001 = vrot.slane %v993, %v1000
        %v1003 = vunpack.c.l.s4 1966171168
        %v1004 = vunpack.c.0.s8 %v1003
        %v1005 = vlaneseq
        %v1006 = vshrl.u32 %v1005, 7
        %v1007 = vsub.s32 %v1004, %v1006
        %v1008 = vrot.slane %v994, %v1007
        %v1009 = vcombine.high %v1001, %v1001
        %v1010 = vcombine.high %v1008, %v1008
        %v1012 = vunpack.c.l.s4 1966171168
        %v1013 = vunpack.c.0.s8 %v1012
        %v1014 = vlaneseq
        %v1015 = vshrl.u32 %v1014, 7
        %v1016 = vsub.s32 %v1013, %v1015
        %v1017 = vrot.slane %v1001, %v1016
        %v1019 = vunpack.c.l.s4 1966171168
        %v1020 = vunpack.c.0.s8 %v1019
        %v1021 = vlaneseq
        %v1022 = vshrl.u32 %v1021, 7
        %v1023 = vsub.s32 %v1020, %v1022
        %v1024 = vrot.slane %v1008, %v1023
        %v1026 = vunpack.c.l.s4 1966171168
        %v1027 = vunpack.c.0.s8 %v1026
        %v1028 = vlaneseq
        %v1029 = vshrl.u32 %v1028, 7
        %v1030 = vsub.s32 %v1027, %v1029
        %v1031 = vrot.slane %v1009, %v1030
        %v1033 = vunpack.c.l.s4 1966171168
        %v1034 = vunpack.c.0.s8 %v1033
        %v1035 = vlaneseq
        %v1036 = vshrl.u32 %v1035, 7
        %v1037 = vsub.s32 %v1034, %v1036
        %v1038 = vrot.slane %v1010, %v1037
        %v1039 = vcombine.high %v1017, %v1017
        %v1040 = vcombine.high %v1024, %v1024
        %v1041 = vcombine.high %v1031, %v1031
        %v1042 = vcombine.high %v1038, %v1038
        %v1043 = vlaneseq
        %v1044 = vshrl.u32 %v1043, 7
        %v1045 = vsub.s32 0, %v1044
        %v1046 = vrot.slane %v1017, %v1045
        %v1047 = vlaneseq
        %v1048 = vshrl.u32 %v1047, 7
        %v1049 = vsub.s32 1, %v1048
        %v1050 = vrot.slane %v1017, %v1049
        %v1051 = vlaneseq
        %v1052 = vshrl.u32 %v1051, 7
        %v1053 = vsub.s32 0, %v1052
        %v1054 = vrot.slane %v1031, %v1053
        %v1055 = vlaneseq
        %v1056 = vshrl.u32 %v1055, 7
        %v1057 = vsub.s32 1, %v1056
        %v1058 = vrot.slane %v1031, %v1057
        %v1059 = vlaneseq
        %v1060 = vshrl.u32 %v1059, 7
        %v1061 = vsub.s32 0, %v1060
        %v1062 = vrot.slane %v1039, %v1061
        %v1063 = vlaneseq
        %v1064 = vshrl.u32 %v1063, 7
        %v1065 = vsub.s32 1, %v1064
        %v1066 = vrot.slane %v1039, %v1065
        %v1067 = vlaneseq
        %v1068 = vshrl.u32 %v1067, 7
        %v1069 = vsub.s32 0, %v1068
        %v1070 = vrot.slane %v1041, %v1069
        %v1071 = vlaneseq
        %v1072 = vshrl.u32 %v1071, 7
        %v1073 = vsub.s32 1, %v1072
        %v1074 = vrot.slane %v1041, %v1073
        %v1075 = vlaneseq
        %v1076 = vshrl.u32 %v1075, 7
        %v1077 = vsub.s32 0, %v1076
        %v1078 = vrot.slane %v1024, %v1077
        %v1079 = vlaneseq
        %v1080 = vshrl.u32 %v1079, 7
        %v1081 = vsub.s32 1, %v1080
        %v1082 = vrot.slane %v1024, %v1081
        %v1083 = vlaneseq
        %v1084 = vshrl.u32 %v1083, 7
        %v1085 = vsub.s32 0, %v1084
        %v1086 = vrot.slane %v1038, %v1085
        %v1087 = vlaneseq
        %v1088 = vshrl.u32 %v1087, 7
        %v1089 = vsub.s32 1, %v1088
        %v1090 = vrot.slane %v1038, %v1089
        %v1091 = vlaneseq
        %v1092 = vshrl.u32 %v1091, 7
        %v1093 = vsub.s32 0, %v1092
        %v1094 = vrot.slane %v1040, %v1093
        %v1095 = vlaneseq
        %v1096 = vshrl.u32 %v1095, 7
        %v1097 = vsub.s32 1, %v1096
        %v1098 = vrot.slane %v1040, %v1097
        %v1099 = vlaneseq
        %v1100 = vshrl.u32 %v1099, 7
        %v1101 = vsub.s32 0, %v1100
        %v1102 = vrot.slane %v1042, %v1101
        %v1103 = vlaneseq
        %v1104 = vshrl.u32 %v1103, 7
        %v1105 = vsub.s32 1, %v1104
        %v1106 = vrot.slane %v1042, %v1105
        %1107 = vrot.lane.b32.xlu0 %v1046, 4
        %v1108 = vpop.permute.xlu0 %1107
        %1109 = vrot.lane.b32.xlu0 %v1050, 4
        %v1110 = vpop.permute.xlu0 %1109
        %1111 = vrot.lane.b32.xlu0 %v1054, 4
        %v1112 = vpop.permute.xlu0 %1111
        %1113 = vrot.lane.b32.xlu0 %v1058, 4
        %v1114 = vpop.permute.xlu0 %1113
        %1115 = vrot.lane.b32.xlu0 %v1062, 4
        %v1116 = vpop.permute.xlu0 %1115
        %1117 = vrot.lane.b32.xlu0 %v1066, 4
        %v1118 = vpop.permute.xlu0 %1117
        %1119 = vrot.lane.b32.xlu0 %v1070, 4
        %v1120 = vpop.permute.xlu0 %1119
        %1121 = vrot.lane.b32.xlu0 %v1074, 4
        %v1122 = vpop.permute.xlu0 %1121
        %1123 = vrot.lane.b32.xlu0 %v1078, 4
        %v1124 = vpop.permute.xlu0 %1123
        %1125 = vrot.lane.b32.xlu0 %v1082, 4
        %v1126 = vpop.permute.xlu0 %1125
        %1127 = vrot.lane.b32.xlu0 %v1086, 4
        %v1128 = vpop.permute.xlu0 %1127
        %1129 = vrot.lane.b32.xlu0 %v1090, 4
        %v1130 = vpop.permute.xlu0 %1129
        %1131 = vrot.lane.b32.xlu0 %v1094, 4
        %v1132 = vpop.permute.xlu0 %1131
        %1133 = vrot.lane.b32.xlu0 %v1098, 4
        %v1134 = vpop.permute.xlu0 %1133
        %1135 = vrot.lane.b32.xlu0 %v1102, 4
        %v1136 = vpop.permute.xlu0 %1135
        %1137 = vrot.lane.b32.xlu0 %v1106, 4
        %v1138 = vpop.permute.xlu0 %1137
        %vm1139 = vcmask 31744
        %v1140 = vsel %vm1139, %v1108, %v1110
        %v1141 = vsel %vm1139, %v1112, %v1114
        %v1142 = vsel %vm1139, %v1116, %v1118
        %v1143 = vsel %vm1139, %v1120, %v1122
        %v1144 = vsel %vm1139, %v1124, %v1126
        %v1145 = vsel %vm1139, %v1128, %v1130
        %v1146 = vsel %vm1139, %v1132, %v1134
        %v1147 = vsel %vm1139, %v1136, %v1138
        %1156 = vst.msk [vmem:[%s213 + $0xe] sm:$0x1] %vm314, %v1140
        %1157 = vst.msk [vmem:[%s213 + $0x1e] sm:$0x1] %vm314, %v1141
        %1158 = vst.msk [vmem:[%s213 + $0x2e] sm:$0x1] %vm314, %v1142
        %1159 = vst.msk [vmem:[%s213 + $0x3e] sm:$0x1] %vm314, %v1143
        %1160 = vst.msk [vmem:[%s213 + $0x4e] sm:$0x1] %vm314, %v1144
        %1161 = vst.msk [vmem:[%s213 + $0x5e] sm:$0x1] %vm314, %v1145
        %1162 = vst.msk [vmem:[%s213 + $0x6e] sm:$0x1] %vm314, %v1146
        %1163 = vst.msk [vmem:[%s213 + $0x7e] sm:$0x1] %vm314, %v1147
        %v1164 = vcombine.high %v255, %v255
        %v1166 = vunpack.c.l.s4 1966171168
        %v1167 = vunpack.c.0.s8 %v1166
        %v1168 = vlaneseq
        %v1169 = vshrl.u32 %v1168, 7
        %v1170 = vsub.s32 %v1167, %v1169
        %v1171 = vrot.slane %v255, %v1170
        %v1173 = vunpack.c.l.s4 1966171168
        %v1174 = vunpack.c.0.s8 %v1173
        %v1175 = vlaneseq
        %v1176 = vshrl.u32 %v1175, 7
        %v1177 = vsub.s32 %v1174, %v1176
        %v1178 = vrot.slane %v1164, %v1177
        %v1179 = vcombine.high %v1171, %v1171
        %v1180 = vcombine.high %v1178, %v1178
        %v1182 = vunpack.c.l.s4 1966171168
        %v1183 = vunpack.c.0.s8 %v1182
        %v1184 = vlaneseq
        %v1185 = vshrl.u32 %v1184, 7
        %v1186 = vsub.s32 %v1183, %v1185
        %v1187 = vrot.slane %v1171, %v1186
        %v1189 = vunpack.c.l.s4 1966171168
        %v1190 = vunpack.c.0.s8 %v1189
        %v1191 = vlaneseq
        %v1192 = vshrl.u32 %v1191, 7
        %v1193 = vsub.s32 %v1190, %v1192
        %v1194 = vrot.slane %v1178, %v1193
        %v1196 = vunpack.c.l.s4 1966171168
        %v1197 = vunpack.c.0.s8 %v1196
        %v1198 = vlaneseq
        %v1199 = vshrl.u32 %v1198, 7
        %v1200 = vsub.s32 %v1197, %v1199
        %v1201 = vrot.slane %v1179, %v1200
        %v1203 = vunpack.c.l.s4 1966171168
        %v1204 = vunpack.c.0.s8 %v1203
        %v1205 = vlaneseq
        %v1206 = vshrl.u32 %v1205, 7
        %v1207 = vsub.s32 %v1204, %v1206
        %v1208 = vrot.slane %v1180, %v1207
        %v1209 = vcombine.high %v1187, %v1187
        %v1210 = vcombine.high %v1194, %v1194
        %v1211 = vcombine.high %v1201, %v1201
        %v1212 = vcombine.high %v1208, %v1208
        %v1213 = vlaneseq
        %v1214 = vshrl.u32 %v1213, 7
        %v1215 = vsub.s32 0, %v1214
        %v1216 = vrot.slane %v1187, %v1215
        %v1217 = vlaneseq
        %v1218 = vshrl.u32 %v1217, 7
        %v1219 = vsub.s32 0, %v1218
        %v1220 = vrot.slane %v1201, %v1219
        %v1221 = vlaneseq
        %v1222 = vshrl.u32 %v1221, 7
        %v1223 = vsub.s32 0, %v1222
        %v1224 = vrot.slane %v1209, %v1223
        %v1225 = vlaneseq
        %v1226 = vshrl.u32 %v1225, 7
        %v1227 = vsub.s32 0, %v1226
        %v1228 = vrot.slane %v1211, %v1227
        %v1229 = vlaneseq
        %v1230 = vshrl.u32 %v1229, 7
        %v1231 = vsub.s32 0, %v1230
        %v1232 = vrot.slane %v1194, %v1231
        %v1233 = vlaneseq
        %v1234 = vshrl.u32 %v1233, 7
        %v1235 = vsub.s32 0, %v1234
        %v1236 = vrot.slane %v1208, %v1235
        %v1237 = vlaneseq
        %v1238 = vshrl.u32 %v1237, 7
        %v1239 = vsub.s32 0, %v1238
        %v1240 = vrot.slane %v1210, %v1239
        %v1241 = vlaneseq
        %v1242 = vshrl.u32 %v1241, 7
        %v1243 = vsub.s32 0, %v1242
        %v1244 = vrot.slane %v1212, %v1243
        %1245 = vrot.lane.b32.xlu0 %v1216, 114
        %v1246 = vpop.permute.xlu0 %1245
        %1247 = vrot.lane.b32.xlu0 %v1220, 114
        %v1248 = vpop.permute.xlu0 %1247
        %1249 = vrot.lane.b32.xlu0 %v1224, 114
        %v1250 = vpop.permute.xlu0 %1249
        %1251 = vrot.lane.b32.xlu0 %v1228, 114
        %v1252 = vpop.permute.xlu0 %1251
        %1253 = vrot.lane.b32.xlu0 %v1232, 114
        %v1254 = vpop.permute.xlu0 %1253
        %1255 = vrot.lane.b32.xlu0 %v1236, 114
        %v1256 = vpop.permute.xlu0 %1255
        %1257 = vrot.lane.b32.xlu0 %v1240, 114
        %v1258 = vpop.permute.xlu0 %1257
        %1259 = vrot.lane.b32.xlu0 %v1244, 114
        %v1260 = vpop.permute.xlu0 %1259
        %1269 = vst.msk [vmem:[%s213 + $0xf] sm:$0x1] %vm314, %v1246
        %1270 = vst.msk [vmem:[%s213 + $0x1f] sm:$0x1] %vm314, %v1248
        %1271 = vst.msk [vmem:[%s213 + $0x2f] sm:$0x1] %vm314, %v1250
        %1272 = vst.msk [vmem:[%s213 + $0x3f] sm:$0x1] %vm314, %v1252
        %1273 = vst.msk [vmem:[%s213 + $0x4f] sm:$0x1] %vm314, %v1254
        %1274 = vst.msk [vmem:[%s213 + $0x5f] sm:$0x1] %vm314, %v1256
        %1275 = vst.msk [vmem:[%s213 + $0x6f] sm:$0x1] %vm314, %v1258
        %1276 = vst.msk [vmem:[%s213 + $0x7f] sm:$0x1] %vm314, %v1260
        %s1277 = sand.u32 %s119, 1
        %s1278 = scalar_lea.sflag [#allocation3], %s1277
        %s1279 = sand.u32 %s119, 1
        %s1280 = smul.addr %s1279, 128
        %s1281 = scalar_lea.vmem [#allocation2], %s1280
        // Predicated region
        $region33: #{basic_conv2d.3} parent=31 // pred_check
          %p1282 = pneg %p129
        $region34: #{basic_conv2d.3} parent=31 // pred_check_branch
          %1284 = sbr.rel (%p1282) target = $region36
        $region35: #{basic_conv2d.3} parent=31 // pred_region
          %s1285 = smul.u32 8, %s22
          %s1287 = ssub.s32 2048, 2048
          %1288 = vsyncadd %s1278, %s1287
          %s1289 = smul.addr %s1285, 2
          %s1290 = smul.addr %s21, 16
          %s1291 = sadd.s32 %s1289, %s1290
          %s1292 = smul.addr %s1291, 128
          %s1293 = scalar_lea.hbm %s3, %s1292
          %s1294 = sshll.u32 %s1281, 4
          %s1295 = int_to_ptr.vmem [resolvable:$true] %s1294
          %1300 = dma.vmem_to_hbm [thread:$0]  %s1295, 2048, %s1293, %s1278, 128, 128, 8
        $region36: #{basic_conv2d.3} parent=31 // pred_fallthru
          _
      $region32: #{basic_conv2d.3} parent=5 // pred_fallthru
        _
      %p1301 = scmp.le.s32.totalorder 2, %s12
      // Predicated region
      $region37: #{basic_conv2d.3} parent=5 // pred_check
        %p1302 = pneg %p1301
      $region38: #{basic_conv2d.3} parent=5 // pred_check_branch
        %1304 = sbr.rel (%p1302) target = $region40
      $region39: #{basic_conv2d.3} parent=5 // pred_region
        %s1305 = ssub.s32 %s12, 2
        // Predicated region
        $region41: #{basic_conv2d.3} parent=39 // pred_check
          %p1306 = pneg %p135
        $region42: #{basic_conv2d.3} parent=39 // pred_check_branch
          %1308 = sbr.rel (%p1306) target = $region44
        $region43: #{basic_conv2d.3} parent=39 // pred_region
          %s1309 = sand.u32 %s120, 1
          %s1310 = scalar_lea.sflag [#allocation3], %s1309
          %s1311 = sand.u32 %s120, 1
          %s1312 = smul.addr %s1311, 128
          %s1313 = scalar_lea.vmem [#allocation2], %s1312
          %1314 = dma.done %s1310, 2048
        $region44: #{basic_conv2d.3} parent=39 // pred_fallthru
          _
      $region40: #{basic_conv2d.3} parent=5 // pred_fallthru
        _
    $region6: #{basic_conv2d.3} parent=1 // loop_footer
      %s16 = sadd.s32 1, %s12
    $region7: #{basic_conv2d.3} parent=1 // loop_footer_branch
      %11 = sbr.rel target = $region3
    $region8: #{basic_conv2d.3} parent=1 // loop_exit
      _
    %1315 = vsyncpa [#allocation3], 1
    %s1316 = scalar_lea.sflag [#allocation3], 1
    %1317 = vsyncpa %s1316, 1

</llo_original>
